<compile_context>
chip_gen: v6e
topology: v6e:2x2x1
jax: 0.10.0
libtpu: 0.0.40
codegen_flags: <defaults>
</compile_context>

<pallas_src>
import functools
import math

import jax
import jax.numpy as jnp
from jax import lax
from jax.experimental import pallas as pl
from jax.experimental.pallas import tpu as pltpu


def _round_up(x, m):
    return (x + m - 1) // m * m


# ----------------------------------------------------------------------------
# Device-generation defaults.
# ----------------------------------------------------------------------------
def _device_kind():
    try:
        devs = jax.devices()
        return devs[0].device_kind.lower() if devs else ""
    except Exception:  # pragma: no cover
        return ""


def _default_config():
    kind = _device_kind()
    if "v5" in kind or "v6" in kind:
        # Integer MXU available; 128 MiB VMEM -> big tiles, fewer weight
        # re-reads per M tile.
        return dict(use_int8_mxu=True, tm=512, ti=512,
                    vmem_limit=96 * 1024 * 1024)
    if "v7" in kind:
        # No integer MXU; 64 MiB VMEM per TensorCore -> smaller reduction tile
        # and a tighter cap so double-buffered weight slices always fit.
        return dict(use_int8_mxu=False, tm=256, ti=256,
                    vmem_limit=48 * 1024 * 1024)
    return dict(use_int8_mxu=False, tm=256, ti=512,
                vmem_limit=64 * 1024 * 1024)


# ----------------------------------------------------------------------------
# Kernel bodies.
# Grid: (M // tm, I // ti); axis 1 is the reduction over intermediate channels
# for the down projection (f32 accumulator in VMEM scratch).
# ----------------------------------------------------------------------------
def _mlp_kernel_bf16(x_ref, wg_ref, sg_ref, wu_ref, su_ref, wd_ref, sd_ref,
                     o_ref, acc_ref):
    """Portable path: int8 weights -> bf16 on the VPU, bf16 MXU dots, f32 acc."""
    j = pl.program_id(1)

    @pl.when(j == 0)
    def _():
        acc_ref[...] = jnp.zeros_like(acc_ref)

    x = x_ref[...]                                           # (tm, H) bf16
    gate = jnp.dot(x, wg_ref[...].astype(jnp.bfloat16),
                   preferred_element_type=jnp.float32) * sg_ref[...]
    up = jnp.dot(x, wu_ref[...].astype(jnp.bfloat16),
                 preferred_element_type=jnp.float32) * su_ref[...]
    hidden = (gate * jax.nn.sigmoid(gate)) * up              # f32 (tm, ti)
    acc_ref[...] += jnp.dot(hidden.astype(jnp.bfloat16),
                            wd_ref[...].astype(jnp.bfloat16),
                            preferred_element_type=jnp.float32)

    @pl.when(j == pl.num_programs(1) - 1)
    def _():
        # Down-proj scale is per output (H) channel -> factors out of the sum.
        o_ref[...] = (acc_ref[...] * sd_ref[...]).astype(o_ref.dtype)


_INT8_DOT_DIMS = (((1,), (0,)), ((), ()))


def _quantize_rows_int8(v):
    """Per-row symmetric int8 quantization: returns (int8 values, f32 scale)."""
    amax = jnp.max(jnp.abs(v), axis=-1, keepdims=True)
    scale = jnp.maximum(amax, 1e-6) * (1.0 / 127.0)
    q = jnp.clip(jnp.round(v * (1.0 / scale)), -127.0, 127.0)
    # f32 -> i32 -> i8 (values already integral, truncation exact).
    return q.astype(jnp.int32).astype(jnp.int8), scale


def _mlp_kernel_int8(x_ref, wg_ref, sg_ref, wu_ref, su_ref, wd_ref, sd_ref,
                     o_ref, acc_ref):
    """Native int8-MXU path (v5e/v6e): dynamic per-token int8 activation quant
    + int8 x int8 -> int32 dots, fp32 scales applied afterwards."""
    j = pl.program_id(1)

    @pl.when(j == 0)
    def _():
        acc_ref[...] = jnp.zeros_like(acc_ref)

    x = x_ref[...].astype(jnp.float32)                       # (tm, H)
    xq, x_scale = _quantize_rows_int8(x)                     # int8, (tm,1) f32

    gate = lax.dot_general(xq, wg_ref[...], _INT8_DOT_DIMS,
                           preferred_element_type=jnp.int32).astype(jnp.float32)
    gate = gate * x_scale * sg_ref[...]
    up = lax.dot_general(xq, wu_ref[...], _INT8_DOT_DIMS,
                         preferred_element_type=jnp.int32).astype(jnp.float32)
    up = up * x_scale * su_ref[...]

    hidden = (gate * jax.nn.sigmoid(gate)) * up              # f32 (tm, ti)
    hq, h_scale = _quantize_rows_int8(hidden)

    down = lax.dot_general(hq, wd_ref[...], _INT8_DOT_DIMS,
                           preferred_element_type=jnp.int32).astype(jnp.float32)
    # h_scale differs per j step -> apply before accumulating.
    acc_ref[...] += down * h_scale * sd_ref[...]

    @pl.when(j == pl.num_programs(1) - 1)
    def _():
        o_ref[...] = acc_ref[...].astype(o_ref.dtype)


# ----------------------------------------------------------------------------
# One-time weight preparation (run at weight-load time, NOT per forward call).
# ----------------------------------------------------------------------------
def prepare_mlp_weights(wg_q, sg, wu_q, su, wd_q, sd, *, ti=None):
    """Transpose PyTorch [out, in] int8 weights to [in, out], pad the
    intermediate dim to a multiple of the reduction tile `ti`, and reshape the
    per-output-channel scales to broadcastable rows."""
    if ti is None:
        ti = _default_config()["ti"]
    I, H = wg_q.shape
    ti = int(min(ti, _round_up(I, 128)))
    I_pad = _round_up(I, ti)

    wg_t = jnp.asarray(wg_q, jnp.int8).T                     # (H, I)
    wu_t = jnp.asarray(wu_q, jnp.int8).T                     # (H, I)
    wd_t = jnp.asarray(wd_q, jnp.int8).T                     # (I, H)
    sg_r = jnp.asarray(sg, jnp.float32).reshape(1, I)
    su_r = jnp.asarray(su, jnp.float32).reshape(1, I)
    sd_r = jnp.asarray(sd, jnp.float32).reshape(1, H)
    if I_pad != I:
        p = I_pad - I
        wg_t = jnp.pad(wg_t, ((0, 0), (0, p)))
        wu_t = jnp.pad(wu_t, ((0, 0), (0, p)))
        wd_t = jnp.pad(wd_t, ((0, p), (0, 0)))
        sg_r = jnp.pad(sg_r, ((0, 0), (0, p)), constant_values=1.0)
        su_r = jnp.pad(su_r, ((0, 0), (0, p)), constant_values=1.0)

    return dict(wg=wg_t, sg=sg_r, wu=wu_t, su=su_r, wd=wd_t, sd=sd_r,
                hidden_size=H, intermediate_size=I, ti=ti)


# ----------------------------------------------------------------------------
# Forward.
# ----------------------------------------------------------------------------
@functools.partial(jax.jit,
                   static_argnames=("tm", "ti", "use_int8", "vmem_limit"))
def _mlp_forward(x, wg, sg, wu, su, wd, sd, *, tm, ti, use_int8, vmem_limit):
    lead = x.shape[:-1]
    H = x.shape[-1]
    M = int(math.prod(lead)) if lead else 1
    I_pad = wg.shape[1]
    M_pad = _round_up(M, tm)

    x2d = x.reshape(M, H)
    if x2d.dtype != jnp.bfloat16:
        # Pass bf16 activations to skip this cast entirely.
        x2d = x2d.astype(jnp.bfloat16)
    if M_pad != M:
        x2d = jnp.pad(x2d, ((0, M_pad - M), (0, 0)))

    grid = (M_pad // tm, I_pad // ti)
    n_m_blocks = grid[0]
    out_dtype = x.dtype

    weight_bytes = wg.size + wu.size + wd.size               # int8 weights
    cost = pl.CostEstimate(
        flops=6 * M_pad * H * I_pad,                          # three matmuls
        transcendentals=M_pad * I_pad,                        # sigmoid
        bytes_accessed=(x2d.size * x2d.dtype.itemsize
                        + n_m_blocks * weight_bytes           # re-streamed
                        + n_m_blocks * (sg.size + su.size + sd.size) * 4
                        + M_pad * H * jnp.dtype(out_dtype).itemsize))

    kernel = _mlp_kernel_int8 if use_int8 else _mlp_kernel_bf16

    out = pl.pallas_call(
        kernel,
        out_shape=jax.ShapeDtypeStruct((M_pad, H), out_dtype),
        grid_spec=pltpu.PrefetchScalarGridSpec(
            num_scalar_prefetch=0,
            grid=grid,
            in_specs=[
                pl.BlockSpec((tm, H), lambda i, j: (i, 0)),   # x tile
                pl.BlockSpec((H, ti), lambda i, j: (0, j)),   # gate weights
                pl.BlockSpec((1, ti), lambda i, j: (0, j)),   # gate scales
                pl.BlockSpec((H, ti), lambda i, j: (0, j)),   # up weights
                pl.BlockSpec((1, ti), lambda i, j: (0, j)),   # up scales
                pl.BlockSpec((ti, H), lambda i, j: (j, 0)),   # down weights
                pl.BlockSpec((1, H), lambda i, j: (0, 0)),    # down scales
            ],
            out_specs=pl.BlockSpec((tm, H), lambda i, j: (i, 0)),
            scratch_shapes=[pltpu.VMEM((tm, H), jnp.float32)],
        ),
        compiler_params=pltpu.CompilerParams(
            dimension_semantics=("parallel", "arbitrary"),
            vmem_limit_bytes=vmem_limit),
        cost_estimate=cost,
    )(x2d, wg, sg, wu, su, wd, sd)

    return out[:M].reshape(*lead, H)


def _pick_tm(M, requested_tm):
    """Adapt the token-tile size so M padding stays small (decode / odd M)."""
    if M <= requested_tm:
        return int(max(32, min(requested_tm, _round_up(M, 32))))
    cands = sorted({c for c in (128, 256, requested_tm) if c <= requested_tm})
    return int(min(cands, key=lambda c: (_round_up(M, c) - M, -c)))


def quant_llama_mlp(x, prepared, *, tm=None, use_int8_mxu=None,
                    vmem_limit_bytes=None):
    """Fused QuantLlamaMLP forward: down(silu(gate(x)) * up(x)).

    x        : [..., H] activations (pass bf16 to avoid an in-jit cast).
    prepared : dict from prepare_mlp_weights() (int8 weights + f32 scales).
    Returns  : [..., H] in x.dtype.
    """
    cfg = _default_config()
    if use_int8_mxu is None:
        use_int8_mxu = cfg["use_int8_mxu"]
    if tm is None:
        tm = cfg["tm"]
    if vmem_limit_bytes is None:
        vmem_limit_bytes = cfg["vmem_limit"]

    H = x.shape[-1]
    assert H == prepared["hidden_size"], "hidden size mismatch"
    M = int(math.prod(x.shape[:-1])) if x.ndim > 1 else 1
    tm = _pick_tm(M, int(tm))

    return _mlp_forward(x, prepared["wg"], prepared["sg"], prepared["wu"],
                        prepared["su"], prepared["wd"], prepared["sd"],
                        tm=tm, ti=int(prepared["ti"]),
                        use_int8=bool(use_int8_mxu),
                        vmem_limit=int(vmem_limit_bytes))


# ----------------------------------------------------------------------------
# Glue: QuantLinear-style per-output-channel symmetric int8 quantization,
# and a pure-JAX reference for testing.
# ----------------------------------------------------------------------------
def quantize_weight_int8(w):
    """w: [out, in] fp32 -> (int8 weight [out, in], fp32 scale [out])."""
    scale = jnp.max(jnp.abs(w), axis=1) / 127.0
    scale = jnp.maximum(scale, 1e-8)
    wq = jnp.clip(jnp.round(w / scale[:, None]), -127, 127).astype(jnp.int8)
    return wq, scale.astype(jnp.float32)


def dequantize(wq, scale):
    return wq.astype(jnp.float32) * scale[:, None]


def reference_mlp(x, wg, wu, wd):
    g = jnp.einsum("bsh,ih->bsi", x, wg)
    u = jnp.einsum("bsh,ih->bsi", x, wu)
    h = (g * jax.nn.sigmoid(g)) * u
    return jnp.einsum("bsi,hi->bsh", h, wd)


def _check(name, out, ref, atol=5e-2, rtol=5e-2):
    out_f32 = out.astype(jnp.float32)
    max_err = float(jnp.max(jnp.abs(out_f32 - ref)))
    assert jnp.allclose(out_f32, ref, atol=atol, rtol=rtol), \
        f"{name}: mismatch vs reference (max abs err {max_err})"


if __name__ == "__main__":
    key = jax.random.PRNGKey(0)
    k_x, k_xd, kg, ku, kd = jax.random.split(key, 5)

    B, S = 2, 64                     # 128 tokens (prefill-shaped)
    hidden_size = 256
    intermediate_size = 512

    s_in = 1.0 / math.sqrt(hidden_size)
    wg = jax.random.uniform(kg, (intermediate_size, hidden_size),
                            jnp.float32, -s_in, s_in)
    wu = jax.random.uniform(ku, (intermediate_size, hidden_size),
                            jnp.float32, -s_in, s_in)
    s_mid = 1.0 / math.sqrt(intermediate_size)
    wd = jax.random.uniform(kd, (hidden_size, intermediate_size),
                            jnp.float32, -s_mid, s_mid)

    wg_q, sg = quantize_weight_int8(wg)
    wu_q, su = quantize_weight_int8(wu)
    wd_q, sd = quantize_weight_int8(wd)

    # Done ONCE at weight-load time (outside any jitted forward).
    # ti=256 here so the small test exercises the I-reduction grid axis.
    prepared = prepare_mlp_weights(wg_q, sg, wu_q, su, wd_q, sd, ti=256)

    wg_f = dequantize(wg_q, sg)
    wu_f = dequantize(wu_q, su)
    wd_f = dequantize(wd_q, sd)

    # bf16 activations (what the surrounding Llama layers actually produce).
    x = jax.random.normal(k_x, (B, S, hidden_size), jnp.float32).astype(
        jnp.bfloat16)
    ref = reference_mlp(x.astype(jnp.float32), wg_f, wu_f, wd_f)

    # 1) Portable bf16-dequant path (default on v7x / unknown chips).
    #    tm=64 so both grid axes are exercised (2 x 2 grid).
    out = jax.block_until_ready(
        quant_llama_mlp(x, prepared, tm=64, use_int8_mxu=False))
    assert out.shape == (B, S, hidden_size) and out.dtype == x.dtype
    _check("bf16 path", out, ref)

    # 2) Native int8-MXU path — only on chips with an integer MXU (v5*/v6*).
    if _default_config()["use_int8_mxu"]:
        out_i8 = jax.block_until_ready(
            quant_llama_mlp(x, prepared, tm=64, use_int8_mxu=True))
        _check("int8 path", out_i8, ref, atol=6e-2, rtol=6e-2)

    # 3) Decode-shaped call (1 token): exercises the adaptive small-tm path
    #    with this chip's default configuration.
    x_dec = jax.random.normal(k_xd, (1, 1, hidden_size), jnp.float32).astype(
        jnp.bfloat16)
    ref_dec = reference_mlp(x_dec.astype(jnp.float32), wg_f, wu_f, wd_f)
    out_dec = jax.block_until_ready(quant_llama_mlp(x_dec, prepared))
    assert out_dec.shape == (1, 1, hidden_size)
    _check("decode", out_dec, ref_dec, atol=6e-2, rtol=6e-2)

    print("KERNEL_OK")
</pallas_src>

<mosaic_0001>
module attributes {stable_mosaic.version = 11 : i64} {
  func.func @_mlp_kernel_bf16(%arg0: i32, %arg1: i32, %arg2: memref<64x256xbf16, #tpu.memory_space<vmem>>, %arg3: memref<256x256xi8, #tpu.memory_space<vmem>>, %arg4: memref<1x256xf32, #tpu.memory_space<vmem>>, %arg5: memref<256x256xi8, #tpu.memory_space<vmem>>, %arg6: memref<1x256xf32, #tpu.memory_space<vmem>>, %arg7: memref<256x256xi8, #tpu.memory_space<vmem>>, %arg8: memref<1x256xf32, #tpu.memory_space<vmem>>, %arg9: memref<64x256xbf16, #tpu.memory_space<vmem>>, %arg10: memref<64x256xf32, #tpu.memory_space<vmem>>) attributes {dimension_semantics = [#tpu.dimension_semantics<parallel>, #tpu.dimension_semantics<arbitrary>], iteration_bounds = array<i64: 2, 2>, scalar_prefetch = 0 : i64, scratch_operands = 1 : i64, tpu.core_type = #tpu.core_type<tc>, window_params = [{transform_indices = @transform_0, window_bounds = array<i64: 64, 256>}, {transform_indices = @transform_1, window_bounds = array<i64: 256, 256>}, {transform_indices = @transform_2, window_bounds = array<i64: 1, 256>}, {transform_indices = @transform_3, window_bounds = array<i64: 256, 256>}, {transform_indices = @transform_4, window_bounds = array<i64: 1, 256>}, {transform_indices = @transform_5, window_bounds = array<i64: 256, 256>}, {pipeline_mode = #tpu.pipeline_mode<synchronous>, transform_indices = @transform_6, window_bounds = array<i64: 1, 256>}, {transform_indices = @transform_7, window_bounds = array<i64: 64, 256>}]} {
    %c0_i32 = arith.constant 0 : i32
    %0 = arith.cmpi eq, %arg1, %c0_i32 : i32
    %1 = arith.extui %0 : i1 to i32
    %c0_i32_0 = arith.constant 0 : i32
    %2 = arith.cmpi ne, %1, %c0_i32_0 : i32
    scf.if %2 {
      %cst_20 = arith.constant 0.000000e+00 : f32
      %33 = vector.broadcast %cst_20 : f32 to vector<64x256xf32>
      %c0_21 = arith.constant 0 : index
      %c0_22 = arith.constant 0 : index
      %34 = vector.load %arg10[%c0_21, %c0_22] : memref<64x256xf32, #tpu.memory_space<vmem>>, vector<64x256xf32>
      tpu.vector_store %arg10[%c0_21, %c0_22], %33 {strides = array<i32>} : memref<64x256xf32, #tpu.memory_space<vmem>>, vector<64x256xf32>,
    } else {
    }
    %c0 = arith.constant 0 : index
    %c0_1 = arith.constant 0 : index
    %3 = vector.load %arg2[%c0, %c0_1] : memref<64x256xbf16, #tpu.memory_space<vmem>>, vector<64x256xbf16>
    %c0_2 = arith.constant 0 : index
    %c0_3 = arith.constant 0 : index
    %4 = vector.load %arg3[%c0_2, %c0_3] : memref<256x256xi8, #tpu.memory_space<vmem>>, vector<256x256xi8>
    %5 = arith.sitofp %4 : vector<256x256xi8> to vector<256x256xbf16>
    %cst = arith.constant dense<0.000000e+00> : vector<64x256xf32>
    %6 = tpu.matmul %3, %5, %cst {dimension_numbers = #tpu.dot_dimension_numbers<[1], [0], [0], [1], [0, 0, 1, 1], [], []>} : vector<64x256xbf16>, vector<256x256xbf16>, vector<64x256xf32> -> vector<64x256xf32>
    %c0_4 = arith.constant 0 : index
    %c0_5 = arith.constant 0 : index
    %7 = vector.load %arg4[%c0_4, %c0_5] : memref<1x256xf32, #tpu.memory_space<vmem>>, vector<1x256xf32>
    %8 = vector.broadcast %7 : vector<1x256xf32> to vector<64x256xf32>
    %9 = arith.mulf %6, %8 : vector<64x256xf32>
    %c0_6 = arith.constant 0 : index
    %c0_7 = arith.constant 0 : index
    %10 = vector.load %arg5[%c0_6, %c0_7] : memref<256x256xi8, #tpu.memory_space<vmem>>, vector<256x256xi8>
    %11 = arith.sitofp %10 : vector<256x256xi8> to vector<256x256xbf16>
    %cst_8 = arith.constant dense<0.000000e+00> : vector<64x256xf32>
    %12 = tpu.matmul %3, %11, %cst_8 {dimension_numbers = #tpu.dot_dimension_numbers<[1], [0], [0], [1], [0, 0, 1, 1], [], []>} : vector<64x256xbf16>, vector<256x256xbf16>, vector<64x256xf32> -> vector<64x256xf32>
    %c0_9 = arith.constant 0 : index
    %c0_10 = arith.constant 0 : index
    %13 = vector.load %arg6[%c0_9, %c0_10] : memref<1x256xf32, #tpu.memory_space<vmem>>, vector<1x256xf32>
    %14 = vector.broadcast %13 : vector<1x256xf32> to vector<64x256xf32>
    %15 = arith.mulf %12, %14 : vector<64x256xf32>
    %16 = arith.negf %9 : vector<64x256xf32>
    %17 = math.exp %16 : vector<64x256xf32>
    %cst_11 = arith.constant 1.000000e+00 : f32
    %18 = vector.broadcast %cst_11 : f32 to vector<64x256xf32>
    %19 = arith.addf %18, %17 : vector<64x256xf32>
    %20 = arith.divf %18, %19 : vector<64x256xf32>
    %21 = arith.mulf %9, %20 : vector<64x256xf32>
    %22 = arith.mulf %21, %15 : vector<64x256xf32>
    %c0_12 = arith.constant 0 : index
    %c0_13 = arith.constant 0 : index
    %23 = vector.load %arg10[%c0_12, %c0_13] : memref<64x256xf32, #tpu.memory_space<vmem>>, vector<64x256xf32>
    %24 = arith.truncf %22 : vector<64x256xf32> to vector<64x256xbf16>
    %c0_14 = arith.constant 0 : index
    %c0_15 = arith.constant 0 : index
    %25 = vector.load %arg7[%c0_14, %c0_15] : memref<256x256xi8, #tpu.memory_space<vmem>>, vector<256x256xi8>
    %26 = arith.sitofp %25 : vector<256x256xi8> to vector<256x256xbf16>
    %cst_16 = arith.constant dense<0.000000e+00> : vector<64x256xf32>
    %27 = tpu.matmul %24, %26, %cst_16 {dimension_numbers = #tpu.dot_dimension_numbers<[1], [0], [0], [1], [0, 0, 1, 1], [], []>} : vector<64x256xbf16>, vector<256x256xbf16>, vector<64x256xf32> -> vector<64x256xf32>
    %28 = arith.addf %23, %27 : vector<64x256xf32>
    %c0_17 = arith.constant 0 : index
    %c0_18 = arith.constant 0 : index
    %29 = vector.load %arg10[%c0_17, %c0_18] : memref<64x256xf32, #tpu.memory_space<vmem>>, vector<64x256xf32>
    tpu.vector_store %arg10[%c0_17, %c0_18], %28 {strides = array<i32>} : memref<64x256xf32, #tpu.memory_space<vmem>>, vector<64x256xf32>,
    %c1_i32 = arith.constant 1 : i32
    %30 = arith.cmpi eq, %arg1, %c1_i32 : i32
    %31 = arith.extui %30 : i1 to i32
    %c0_i32_19 = arith.constant 0 : i32
    %32 = arith.cmpi ne, %31, %c0_i32_19 : i32
    scf.if %32 {
      %c0_20 = arith.constant 0 : index
      %c0_21 = arith.constant 0 : index
      %33 = vector.load %arg10[%c0_20, %c0_21] : memref<64x256xf32, #tpu.memory_space<vmem>>, vector<64x256xf32>
      %c0_22 = arith.constant 0 : index
      %c0_23 = arith.constant 0 : index
      %34 = vector.load %arg8[%c0_22, %c0_23] : memref<1x256xf32, #tpu.memory_space<vmem>>, vector<1x256xf32>
      %35 = vector.broadcast %34 : vector<1x256xf32> to vector<64x256xf32>
      %36 = arith.mulf %33, %35 : vector<64x256xf32>
      %37 = arith.truncf %36 : vector<64x256xf32> to vector<64x256xbf16>
      %c0_24 = arith.constant 0 : index
      %c0_25 = arith.constant 0 : index
      %38 = vector.load %arg9[%c0_24, %c0_25] : memref<64x256xbf16, #tpu.memory_space<vmem>>, vector<64x256xbf16>
      tpu.vector_store %arg9[%c0_24, %c0_25], %37 {strides = array<i32>} : memref<64x256xbf16, #tpu.memory_space<vmem>>, vector<64x256xbf16>,
    } else {
    }
    return
  }
  func.func @transform_0(%arg0: i32, %arg1: i32) -> (i32, i32) {
    %c0_i32 = arith.constant 0 : i32
    %c0_i32_0 = arith.constant 0 : i32
    return %arg0, %c0_i32 : i32, i32
  }
  func.func @transform_1(%arg0: i32, %arg1: i32) -> (i32, i32) {
    %c0_i32 = arith.constant 0 : i32
    %c0_i32_0 = arith.constant 0 : i32
    return %c0_i32, %arg1 : i32, i32
  }
  func.func @transform_2(%arg0: i32, %arg1: i32) -> (i32, i32) {
    %c0_i32 = arith.constant 0 : i32
    %c0_i32_0 = arith.constant 0 : i32
    return %c0_i32, %arg1 : i32, i32
  }
  func.func @transform_3(%arg0: i32, %arg1: i32) -> (i32, i32) {
    %c0_i32 = arith.constant 0 : i32
    %c0_i32_0 = arith.constant 0 : i32
    return %c0_i32, %arg1 : i32, i32
  }
  func.func @transform_4(%arg0: i32, %arg1: i32) -> (i32, i32) {
    %c0_i32 = arith.constant 0 : i32
    %c0_i32_0 = arith.constant 0 : i32
    return %c0_i32, %arg1 : i32, i32
  }
  func.func @transform_5(%arg0: i32, %arg1: i32) -> (i32, i32) {
    %c0_i32 = arith.constant 0 : i32
    %c0_i32_0 = arith.constant 0 : i32
    return %arg1, %c0_i32 : i32, i32
  }
  func.func @transform_6(%arg0: i32, %arg1: i32) -> (i32, i32) {
    %c0_i32 = arith.constant 0 : i32
    %c0_i32_0 = arith.constant 0 : i32
    %c0_i32_1 = arith.constant 0 : i32
    return %c0_i32, %c0_i32_0 : i32, i32
  }
  func.func @transform_7(%arg0: i32, %arg1: i32) -> (i32, i32) {
    %c0_i32 = arith.constant 0 : i32
    %c0_i32_0 = arith.constant 0 : i32
    return %arg0, %c0_i32 : i32, i32
  }
}

</mosaic_0001>

<llo_original>
// kernel: _mlp_forward.1
$region0: #{_mlp_forward.1}
  #allocation0 [shape = 'u32[]', space=smem, size = 0x4, offset = 0x4, fixed_abs, tag = 'smem constant byte address 0x4 - core index']
  #allocation1 [shape = 'u32[144,128]{1,0:T(1,128)}', space=vmem, size = 0x12000, scoped, tag = 'internal scratch']
  #allocation2 [shape = 'f32[64,256]{1,0:T(8,128)}', space=vmem, size = 0x10000, scoped, tag = 'scratch operand']
  %s0 = inlined_call_operand.hbm [shape: bf16[128,256], index: 0, kind: input, shape index: {}]
  %s1 = inlined_call_operand.hbm [shape: s8[256,512], index: 1, kind: input, shape index: {}]
  %s2 = inlined_call_operand.vmem [shape: f32[1,512], index: 2, kind: input, shape index: {}]
  %s3 = inlined_call_operand.hbm [shape: s8[256,512], index: 3, kind: input, shape index: {}]
  %s4 = inlined_call_operand.vmem [shape: f32[1,512], index: 4, kind: input, shape index: {}]
  %s5 = inlined_call_operand.hbm [shape: s8[512,256], index: 5, kind: input, shape index: {}]
  %s6 = inlined_call_operand.vmem [shape: f32[1,256], index: 6, kind: input, shape index: {}]
  %s7 = inlined_call_operand.hbm [shape: bf16[128,256], index: 7, kind: output, shape index: {}]
  %s8 = sld [smem:[#allocation0]]
  $region85: #{_mlp_forward.1} parent=0
    _
  %s10 = ssub.s32 1, %s8
  %s11 = scalar_select 0, %s10, %s8
  $region1: #{_mlp_forward.1} parent=0
    #allocation3 [shape = 'u8[65536]{0}', space=vmem, size = 0x10000, scoped, tag = 'input window, operand 0']
    #allocation4 [shape = 's32[2]{0}', space=sflag, size = 0x8, scoped, tag = 'scoped memory for _mlp_forward.1']
    #allocation5 [shape = 's32[2]{0}', space=sflag, size = 0x8, scoped, tag = 'scoped memory for _mlp_forward.1']
    #allocation6 [shape = 'u8[131072]{0}', space=vmem, size = 0x20000, scoped, tag = 'input window, operand 1']
    #allocation7 [shape = 's32[2]{0}', space=sflag, size = 0x8, scoped, tag = 'scoped memory for _mlp_forward.1']
    #allocation8 [shape = 'u8[131072]{0}', space=vmem, size = 0x20000, scoped, tag = 'input window, operand 3']
    #allocation9 [shape = 'u8[131072]{0}', space=vmem, size = 0x20000, scoped, tag = 'input window, operand 5']
    #allocation10 [shape = 's32[2]{0}', space=sflag, size = 0x8, scoped, tag = 'scoped memory for _mlp_forward.1']
    #allocation11 [shape = 'u8[65536]{0}', space=vmem, size = 0x10000, scoped, tag = 'output window, operand 0']
    %12 = vsyncpa [#allocation4], 0
    %s13 = scalar_lea.sflag [#allocation4], 1
    %14 = vsyncpa %s13, 0
    %15 = vsyncpa [#allocation7], 0
    %s16 = scalar_lea.sflag [#allocation7], 1
    %17 = vsyncpa %s16, 0
    %18 = vsyncpa [#allocation10], 0
    %s19 = scalar_lea.sflag [#allocation10], 1
    %20 = vsyncpa %s19, 0
    %21 = vsyncpa [#allocation5], 0
    %s22 = scalar_lea.sflag [#allocation5], 1
    %23 = vsyncpa %s22, 0
    loop: start=0, step=1, limit=6
    $region2: #{_mlp_forward.1} parent=1 // loop_pre_header
      _
    $region3: #{_mlp_forward.1} parent=1 // loop_header
      %s25 = sphi 0, %s29
      %p26 = scmp.ge.s32.totalorder %s25, 6
      %s32 = sphi 0, %s44
      %s33 = sphi 0, %s40
      %s34 = sphi 0, %s32
      %s35 = sphi 0, %s33
      %s36 = sphi 0, %s34
      %s37 = sphi 0, %s35
      %s47 = sphi 0, %s49
      %s50 = sphi 0, %s47
      %s51 = sphi 0, %s50
      %s67 = sphi 0, %s51
      %s73 = sphi 0, %s75
      %s76 = sphi 0, %s73
      %s77 = sphi 0, %s76
      %s93 = sphi 0, %s77
      %s99 = sphi 0, %s101
      %s102 = sphi 0, %s99
      %s103 = sphi 0, %s102
      %s119 = sphi 0, %s103
      %s125 = sphi 0, %s127
      %s128 = sphi 0, %s125
      %s129 = sphi 0, %s128
      %s145 = sphi 0, %s129
      %s151 = sphi 0, %s153
      %s154 = sphi 0, %s151
      %s155 = sphi 0, %s154
      %s171 = sphi 0, %s155
      %s177 = sphi 0, %s179
      %s180 = sphi 0, %s177
      %s181 = sphi 0, %s180
      %s197 = sphi 0, %s181
      %s201 = sphi 0, %s201
      %s203 = sphi 0, %s201
      %s204 = sphi 0, %s203
      %s218 = sphi 0, %s204
      %s224 = sphi 0, %s226
      %s227 = sphi 0, %s224
      %s228 = sphi 0, %s227
      %s244 = sphi 0, %s228
    $region4: #{_mlp_forward.1} parent=1 // loop_header_branch
      %28 = sbr.rel (%p26) target = $region8
    $region5: #{_mlp_forward.1} parent=1 // loop_body
      %s30 = ssub.s32 %s25, 1
      %s31 = ssub.s32 %s25, 2
      %s38 = sadd.s32 1, %s33
      %p39 = scmp.ge.s32.totalorder %s38, 2
      %s40 = scalar_select %p39, 0, %s38
      %s41 = sadd.s32 1, %s32
      %s42 = scalar_select %p39, %s41, %s32
      %p43 = scmp.ge.s32.totalorder %s42, 2
      %s44 = scalar_select %p43, 0, %s42
      %s45 = ssub.s32 %s32, %s44
      %p46 = scmp.eq.s32.totalorder %s45, 0
      %s48 = sadd.s32 %s47, 1
      %s49 = scalar_select %p46, %s47, %s48
      %p52 = pneg %p46
      %p53 = scmp.eq.s32.totalorder %s25, 3
      %p54 = por %p52, %p53
      %p55 = scmp.ne.s32.totalorder %s47, %s50
      %p56 = scmp.eq.s32.totalorder %s25, 0
      %p57 = por %p55, %p56
      %p58 = scmp.ne.s32.totalorder %s47, %s50
      %p59 = scmp.eq.s32.totalorder %s30, 3
      %p60 = por %p58, %p59
      %p61 = scmp.ne.s32.totalorder %s50, %s51
      %p62 = scmp.eq.s32.totalorder %s30, 0
      %p63 = por %p61, %p62
      %p64 = scmp.ne.s32.totalorder %s50, %s51
      %p65 = scmp.eq.s32.totalorder %s31, 3
      %p66 = por %p64, %p65
      %p68 = scmp.ne.s32.totalorder %s51, %s67
      %p69 = scmp.eq.s32.totalorder %s31, 0
      %p70 = por %p68, %p69
      %s71 = ssub.s32 %s33, %s40
      %p72 = scmp.eq.s32.totalorder %s71, 0
      %s74 = sadd.s32 %s73, 1
      %s75 = scalar_select %p72, %s73, %s74
      %p78 = pneg %p72
      %p79 = scmp.eq.s32.totalorder %s25, 3
      %p80 = por %p78, %p79
      %p81 = scmp.ne.s32.totalorder %s73, %s76
      %p82 = scmp.eq.s32.totalorder %s25, 0
      %p83 = por %p81, %p82
      %p84 = scmp.ne.s32.totalorder %s73, %s76
      %p85 = scmp.eq.s32.totalorder %s30, 3
      %p86 = por %p84, %p85
      %p87 = scmp.ne.s32.totalorder %s76, %s77
      %p88 = scmp.eq.s32.totalorder %s30, 0
      %p89 = por %p87, %p88
      %p90 = scmp.ne.s32.totalorder %s76, %s77
      %p91 = scmp.eq.s32.totalorder %s31, 3
      %p92 = por %p90, %p91
      %p94 = scmp.ne.s32.totalorder %s77, %s93
      %p95 = scmp.eq.s32.totalorder %s31, 0
      %p96 = por %p94, %p95
      %s97 = ssub.s32 %s33, %s40
      %p98 = scmp.eq.s32.totalorder %s97, 0
      %s100 = sadd.s32 %s99, 1
      %s101 = scalar_select %p98, %s99, %s100
      %p104 = pneg %p98
      %p105 = scmp.eq.s32.totalorder %s25, 3
      %p106 = por %p104, %p105
      %p107 = scmp.ne.s32.totalorder %s99, %s102
      %p108 = scmp.eq.s32.totalorder %s25, 0
      %p109 = por %p107, %p108
      %p110 = scmp.ne.s32.totalorder %s99, %s102
      %p111 = scmp.eq.s32.totalorder %s30, 3
      %p112 = por %p110, %p111
      %p113 = scmp.ne.s32.totalorder %s102, %s103
      %p114 = scmp.eq.s32.totalorder %s30, 0
      %p115 = por %p113, %p114
      %p116 = scmp.ne.s32.totalorder %s102, %s103
      %p117 = scmp.eq.s32.totalorder %s31, 3
      %p118 = por %p116, %p117
      %p120 = scmp.ne.s32.totalorder %s103, %s119
      %p121 = scmp.eq.s32.totalorder %s31, 0
      %p122 = por %p120, %p121
      %s123 = ssub.s32 %s33, %s40
      %p124 = scmp.eq.s32.totalorder %s123, 0
      %s126 = sadd.s32 %s125, 1
      %s127 = scalar_select %p124, %s125, %s126
      %p130 = pneg %p124
      %p131 = scmp.eq.s32.totalorder %s25, 3
      %p132 = por %p130, %p131
      %p133 = scmp.ne.s32.totalorder %s125, %s128
      %p134 = scmp.eq.s32.totalorder %s25, 0
      %p135 = por %p133, %p134
      %p136 = scmp.ne.s32.totalorder %s125, %s128
      %p137 = scmp.eq.s32.totalorder %s30, 3
      %p138 = por %p136, %p137
      %p139 = scmp.ne.s32.totalorder %s128, %s129
      %p140 = scmp.eq.s32.totalorder %s30, 0
      %p141 = por %p139, %p140
      %p142 = scmp.ne.s32.totalorder %s128, %s129
      %p143 = scmp.eq.s32.totalorder %s31, 3
      %p144 = por %p142, %p143
      %p146 = scmp.ne.s32.totalorder %s129, %s145
      %p147 = scmp.eq.s32.totalorder %s31, 0
      %p148 = por %p146, %p147
      %s149 = ssub.s32 %s33, %s40
      %p150 = scmp.eq.s32.totalorder %s149, 0
      %s152 = sadd.s32 %s151, 1
      %s153 = scalar_select %p150, %s151, %s152
      %p156 = pneg %p150
      %p157 = scmp.eq.s32.totalorder %s25, 3
      %p158 = por %p156, %p157
      %p159 = scmp.ne.s32.totalorder %s151, %s154
      %p160 = scmp.eq.s32.totalorder %s25, 0
      %p161 = por %p159, %p160
      %p162 = scmp.ne.s32.totalorder %s151, %s154
      %p163 = scmp.eq.s32.totalorder %s30, 3
      %p164 = por %p162, %p163
      %p165 = scmp.ne.s32.totalorder %s154, %s155
      %p166 = scmp.eq.s32.totalorder %s30, 0
      %p167 = por %p165, %p166
      %p168 = scmp.ne.s32.totalorder %s154, %s155
      %p169 = scmp.eq.s32.totalorder %s31, 3
      %p170 = por %p168, %p169
      %p172 = scmp.ne.s32.totalorder %s155, %s171
      %p173 = scmp.eq.s32.totalorder %s31, 0
      %p174 = por %p172, %p173
      %s175 = ssub.s32 %s33, %s40
      %p176 = scmp.eq.s32.totalorder %s175, 0
      %s178 = sadd.s32 %s177, 1
      %s179 = scalar_select %p176, %s177, %s178
      %p182 = pneg %p176
      %p183 = scmp.eq.s32.totalorder %s25, 3
      %p184 = por %p182, %p183
      %p185 = scmp.ne.s32.totalorder %s177, %s180
      %p186 = scmp.eq.s32.totalorder %s25, 0
      %p187 = por %p185, %p186
      %p188 = scmp.ne.s32.totalorder %s177, %s180
      %p189 = scmp.eq.s32.totalorder %s30, 3
      %p190 = por %p188, %p189
      %p191 = scmp.ne.s32.totalorder %s180, %s181
      %p192 = scmp.eq.s32.totalorder %s30, 0
      %p193 = por %p191, %p192
      %p194 = scmp.ne.s32.totalorder %s180, %s181
      %p195 = scmp.eq.s32.totalorder %s31, 3
      %p196 = por %p194, %p195
      %p198 = scmp.ne.s32.totalorder %s181, %s197
      %p199 = scmp.eq.s32.totalorder %s31, 0
      %p200 = por %p198, %p199
      %s202 = sadd.s32 %s201, 1
      %p205 = scmp.eq.s32.totalorder %s25, 3
      %p206 = scmp.ne.s32.totalorder %s201, %s203
      %p207 = scmp.eq.s32.totalorder %s25, 0
      %p208 = por %p206, %p207
      %p209 = scmp.ne.s32.totalorder %s201, %s203
      %p210 = scmp.eq.s32.totalorder %s30, 3
      %p211 = por %p209, %p210
      %p212 = scmp.ne.s32.totalorder %s203, %s204
      %p213 = scmp.eq.s32.totalorder %s30, 0
      %p214 = por %p212, %p213
      %p215 = scmp.ne.s32.totalorder %s203, %s204
      %p216 = scmp.eq.s32.totalorder %s31, 3
      %p217 = por %p215, %p216
      %p219 = scmp.ne.s32.totalorder %s204, %s218
      %p220 = scmp.eq.s32.totalorder %s31, 0
      %p221 = por %p219, %p220
      %s222 = ssub.s32 %s32, %s44
      %p223 = scmp.eq.s32.totalorder %s222, 0
      %s225 = sadd.s32 %s224, 1
      %s226 = scalar_select %p223, %s224, %s225
      %p229 = pneg %p223
      %p230 = scmp.eq.s32.totalorder %s25, 3
      %p231 = por %p229, %p230
      %p232 = scmp.ne.s32.totalorder %s224, %s227
      %p233 = scmp.eq.s32.totalorder %s25, 0
      %p234 = por %p232, %p233
      %p235 = scmp.ne.s32.totalorder %s224, %s227
      %p236 = scmp.eq.s32.totalorder %s30, 3
      %p237 = por %p235, %p236
      %p238 = scmp.ne.s32.totalorder %s227, %s228
      %p239 = scmp.eq.s32.totalorder %s30, 0
      %p240 = por %p238, %p239
      %p241 = scmp.ne.s32.totalorder %s227, %s228
      %p242 = scmp.eq.s32.totalorder %s31, 3
      %p243 = por %p241, %p242
      %p245 = scmp.ne.s32.totalorder %s228, %s244
      %p246 = scmp.eq.s32.totalorder %s31, 0
      %p247 = por %p245, %p246
      %p248 = scmp.le.s32.totalorder 1, %s25
      %p249 = scmp.lt.s32.totalorder %s25, 5
      %p250 = pnand %p248, %p249
      %p251 = pneg %p250
      // Predicated region
      $region9: #{_mlp_forward.1} parent=5 // pred_check
        _
      $region10: #{_mlp_forward.1} parent=5 // pred_check_branch
        %253 = sbr.rel (%p250) target = $region12
      $region11: #{_mlp_forward.1} parent=5 // pred_region
        %s254 = ssub.s32 %s25, 1
        // Predicated region
        $region13: #{_mlp_forward.1} parent=11 // pred_check
          %p255 = pneg %p214
        $region14: #{_mlp_forward.1} parent=11 // pred_check_branch
          %257 = sbr.rel (%p255) target = $region16
        $region15: #{_mlp_forward.1} parent=11 // pred_region
          _
        $region16: #{_mlp_forward.1} parent=11 // pred_fallthru
          _
      $region12: #{_mlp_forward.1} parent=5 // pred_fallthru
        _
      %p258 = scmp.lt.s32.totalorder %s25, 4
      // Predicated region
      $region17: #{_mlp_forward.1} parent=5 // pred_check
        %p259 = pneg %p258
      $region18: #{_mlp_forward.1} parent=5 // pred_check_branch
        %261 = sbr.rel (%p259) target = $region20
      $region19: #{_mlp_forward.1} parent=5 // pred_region
        // Predicated region
        $region21: #{_mlp_forward.1} parent=19 // pred_check
          %p262 = pneg %p57
        $region22: #{_mlp_forward.1} parent=19 // pred_check_branch
          %264 = sbr.rel (%p262) target = $region24
        $region23: #{_mlp_forward.1} parent=19 // pred_region
          %s265 = sand.u32 %s47, 1
          %s266 = scalar_lea.sflag [#allocation4], %s265
          %s267 = sand.u32 %s47, 1
          %s268 = smul.addr %s267, 64
          %s269 = scalar_lea.vmem [#allocation3], %s268
          %s270 = smul.u32 8, %s32
          %s272 = ssub.s32 1024, 1024
          %273 = vsyncadd %s266, %s272
          %s274 = smul.addr %s270, 2
          %s275 = smul.addr %s274, 64
          %s276 = scalar_lea.hbm %s0, %s275
          %s277 = sshll.u32 %s269, 4
          %s278 = int_to_ptr.vmem [resolvable:$true] %s277
          %283 = dma.hbm_to_vmem [thread:$0]  %s276, 1024, %s278, %s266, 128, 128, 8
        $region24: #{_mlp_forward.1} parent=19 // pred_fallthru
          _
        // Predicated region
        $region25: #{_mlp_forward.1} parent=19 // pred_check
          %p284 = pneg %p83
        $region26: #{_mlp_forward.1} parent=19 // pred_check_branch
          %286 = sbr.rel (%p284) target = $region28
        $region27: #{_mlp_forward.1} parent=19 // pred_region
          %s287 = sand.u32 %s25, 1
          %s288 = scalar_lea.sflag [#allocation7], %s287
          %s289 = sand.u32 %s73, 1
          %s290 = smul.addr %s289, 128
          %s291 = scalar_lea.vmem [#allocation6], %s290
          %s292 = smul.u32 2, %s33
          %s294 = ssub.s32 2048, 2048
          %295 = vsyncadd %s288, %s294
          %s296 = smul.addr %s292, 128
          %s297 = scalar_lea.hbm %s1, %s296
          %s298 = sshll.u32 %s291, 4
          %s299 = int_to_ptr.vmem [resolvable:$true] %s298
          %304 = dma.hbm_to_vmem [thread:$0]  %s297, 2048, %s299, %s288, 512, 256, 16
        $region28: #{_mlp_forward.1} parent=19 // pred_fallthru
          _
        // Predicated region
        $region29: #{_mlp_forward.1} parent=19 // pred_check
          %p305 = pneg %p109
        $region30: #{_mlp_forward.1} parent=19 // pred_check_branch
          %307 = sbr.rel (%p305) target = $region32
        $region31: #{_mlp_forward.1} parent=19 // pred_region
          %s308 = smul.u32 2, %s33
          %p309 = scmp.lt.s32.totalorder %s308, 3
          %s310 = scalar_select %p309, %s308, 3
          %s311 = scalar_lea.vmem %s2, %s310
          %s312 = smul.u32 2, %s33
        $region32: #{_mlp_forward.1} parent=19 // pred_fallthru
          _
        // Predicated region
        $region33: #{_mlp_forward.1} parent=19 // pred_check
          %p313 = pneg %p135
        $region34: #{_mlp_forward.1} parent=19 // pred_check_branch
          %315 = sbr.rel (%p313) target = $region36
        $region35: #{_mlp_forward.1} parent=19 // pred_region
          %s316 = sand.u32 %s25, 1
          %s317 = scalar_lea.sflag [#allocation7], %s316
          %s318 = sand.u32 %s125, 1
          %s319 = smul.addr %s318, 128
          %s320 = scalar_lea.vmem [#allocation8], %s319
          %s321 = smul.u32 2, %s33
          %s323 = ssub.s32 2048, 2048
          %324 = vsyncadd %s317, %s323
          %s325 = smul.addr %s321, 128
          %s326 = scalar_lea.hbm %s3, %s325
          %s327 = sshll.u32 %s320, 4
          %s328 = int_to_ptr.vmem [resolvable:$true] %s327
          %333 = dma.hbm_to_vmem [thread:$0]  %s326, 2048, %s328, %s317, 512, 256, 16
        $region36: #{_mlp_forward.1} parent=19 // pred_fallthru
          _
        // Predicated region
        $region37: #{_mlp_forward.1} parent=19 // pred_check
          %p334 = pneg %p161
        $region38: #{_mlp_forward.1} parent=19 // pred_check_branch
          %336 = sbr.rel (%p334) target = $region40
        $region39: #{_mlp_forward.1} parent=19 // pred_region
          %s337 = smul.u32 2, %s33
          %p338 = scmp.lt.s32.totalorder %s337, 3
          %s339 = scalar_select %p338, %s337, 3
          %s340 = scalar_lea.vmem %s4, %s339
          %s341 = smul.u32 2, %s33
        $region40: #{_mlp_forward.1} parent=19 // pred_fallthru
          _
        // Predicated region
        $region41: #{_mlp_forward.1} parent=19 // pred_check
          %p342 = pneg %p187
        $region42: #{_mlp_forward.1} parent=19 // pred_check_branch
          %344 = sbr.rel (%p342) target = $region44
        $region43: #{_mlp_forward.1} parent=19 // pred_region
          %s345 = sand.u32 %s177, 1
          %s346 = scalar_lea.sflag [#allocation10], %s345
          %s347 = sand.u32 %s177, 1
          %s348 = smul.addr %s347, 128
          %s349 = scalar_lea.vmem [#allocation9], %s348
          %s350 = smul.u32 8, %s33
          %s352 = ssub.s32 2048, 2048
          %353 = vsyncadd %s346, %s352
          %s354 = smul.addr %s350, 2
          %s355 = smul.addr %s354, 128
          %s356 = scalar_lea.hbm %s5, %s355
          %s357 = sshll.u32 %s349, 4
          %s358 = int_to_ptr.vmem [resolvable:$true] %s357
          %363 = dma.hbm_to_vmem [thread:$0]  %s356, 2048, %s358, %s346, 256, 256, 16
        $region44: #{_mlp_forward.1} parent=19 // pred_fallthru
          _
      $region20: #{_mlp_forward.1} parent=5 // pred_fallthru
        _
      %p364 = scmp.le.s32.totalorder 1, %s25
      %p365 = scmp.lt.s32.totalorder %s25, 5
      %p366 = pnand %p364, %p365
      %p367 = pneg %p366
      // Predicated region
      $region45: #{_mlp_forward.1} parent=5 // pred_check
        _
      $region46: #{_mlp_forward.1} parent=5 // pred_check_branch
        %369 = sbr.rel (%p366) target = $region48
      $region47: #{_mlp_forward.1} parent=5 // pred_region
        %s370 = ssub.s32 %s25, 1
        %s371 = sand.u32 %s50, 1
        %s372 = scalar_lea.sflag [#allocation4], %s371
        %s373 = sand.u32 %s50, 1
        %s374 = smul.addr %s373, 64
        %s375 = scalar_lea.vmem [#allocation3], %s374
        // Predicated region
        $region49: #{_mlp_forward.1} parent=47 // pred_check
          %p376 = pneg %p63
        $region50: #{_mlp_forward.1} parent=47 // pred_check_branch
          %378 = sbr.rel (%p376) target = $region52
        $region51: #{_mlp_forward.1} parent=47 // pred_region
          %379 = dma.done %s372, 1024
        $region52: #{_mlp_forward.1} parent=47 // pred_fallthru
          _
        %s380 = sand.u32 %s30, 1
        %s381 = scalar_lea.sflag [#allocation7], %s380
        %s382 = sand.u32 %s76, 1
        %s383 = smul.addr %s382, 128
        %s384 = scalar_lea.vmem [#allocation6], %s383
        // Predicated region
        $region53: #{_mlp_forward.1} parent=47 // pred_check
          %p385 = pneg %p89
        $region54: #{_mlp_forward.1} parent=47 // pred_check_branch
          %387 = sbr.rel (%p385) target = $region56
        $region55: #{_mlp_forward.1} parent=47 // pred_region
          %388 = dma.done %s381, 2048
        $region56: #{_mlp_forward.1} parent=47 // pred_fallthru
          _
        %s389 = sand.u32 %s30, 1
        %s390 = scalar_lea.sflag [#allocation7], %s389
        %s391 = sand.u32 %s128, 1
        %s392 = smul.addr %s391, 128
        %s393 = scalar_lea.vmem [#allocation8], %s392
        // Predicated region
        $region57: #{_mlp_forward.1} parent=47 // pred_check
          %p394 = pneg %p141
        $region58: #{_mlp_forward.1} parent=47 // pred_check_branch
          %396 = sbr.rel (%p394) target = $region60
        $region59: #{_mlp_forward.1} parent=47 // pred_region
          %397 = dma.done %s390, 2048
        $region60: #{_mlp_forward.1} parent=47 // pred_fallthru
          _
        %s398 = sand.u32 %s180, 1
        %s399 = scalar_lea.sflag [#allocation10], %s398
        %s400 = sand.u32 %s180, 1
        %s401 = smul.addr %s400, 128
        %s402 = scalar_lea.vmem [#allocation9], %s401
        // Predicated region
        $region61: #{_mlp_forward.1} parent=47 // pred_check
          %p403 = pneg %p193
        $region62: #{_mlp_forward.1} parent=47 // pred_check_branch
          %405 = sbr.rel (%p403) target = $region64
        $region63: #{_mlp_forward.1} parent=47 // pred_region
          %406 = dma.done %s399, 2048
        $region64: #{_mlp_forward.1} parent=47 // pred_fallthru
          _
        %s407 = sand.u32 %s50, 1
        %s408 = scalar_lea.sflag [#allocation4], %s407
        %s409 = sand.u32 %s50, 1
        %s410 = smul.addr %s409, 64
        %s411 = scalar_lea.vmem [#allocation3], %s410
        %p412 = pneg %p63
        %p413 = pneg %p60
        %s414 = sand.u32 %s30, 1
        %s415 = scalar_lea.sflag [#allocation7], %s414
        %s416 = sand.u32 %s76, 1
        %s417 = smul.addr %s416, 128
        %s418 = scalar_lea.vmem [#allocation6], %s417
        %p419 = pneg %p89
        %p420 = pneg %p86
        %s421 = smul.u32 2, %s35
        %p422 = scmp.lt.s32.totalorder %s421, 3
        %s423 = scalar_select %p422, %s421, 3
        %s424 = scalar_lea.vmem %s2, %s423
        %p425 = pneg %p115
        %p426 = pneg %p112
        %s427 = sand.u32 %s30, 1
        %s428 = scalar_lea.sflag [#allocation7], %s427
        %s429 = sand.u32 %s128, 1
        %s430 = smul.addr %s429, 128
        %s431 = scalar_lea.vmem [#allocation8], %s430
        %p432 = pneg %p141
        %p433 = pneg %p138
        %s434 = smul.u32 2, %s35
        %p435 = scmp.lt.s32.totalorder %s434, 3
        %s436 = scalar_select %p435, %s434, 3
        %s437 = scalar_lea.vmem %s4, %s436
        %p438 = pneg %p167
        %p439 = pneg %p164
        %s440 = sand.u32 %s180, 1
        %s441 = scalar_lea.sflag [#allocation10], %s440
        %s442 = sand.u32 %s180, 1
        %s443 = smul.addr %s442, 128
        %s444 = scalar_lea.vmem [#allocation9], %s443
        %p445 = pneg %p193
        %p446 = pneg %p190
        %p447 = pneg %p214
        %p448 = pneg %p211
        %p449 = pneg %p240
        %p450 = pneg %p237
        %s451 = sand.u32 %s227, 1
        %s452 = scalar_lea.sflag [#allocation5], %s451
        %s453 = sand.u32 %s227, 1
        %s454 = smul.addr %s453, 64
        %s455 = scalar_lea.vmem [#allocation11], %s454
        %s456 = smul.u32 8, %s34
        %s457 = smul.u32 2, %s35
        %s458 = smul.u32 2, %s35
        %p459 = scmp.lt.s32.totalorder %s458, 3
        %s460 = scalar_select %p459, %s458, 3
        %s461 = scalar_lea.vmem %s2, %s460
        %s462 = smul.u32 2, %s35
        %s463 = smul.u32 2, %s35
        %s464 = smul.u32 2, %s35
        %p465 = scmp.lt.s32.totalorder %s464, 3
        %s466 = scalar_select %p465, %s464, 3
        %s467 = scalar_lea.vmem %s4, %s466
        %s468 = smul.u32 2, %s35
        %s469 = smul.u32 8, %s35
        %s470 = smul.u32 8, %s34
        %p471 = scmp.eq.s32.totalorder %s35, 0
        // Predicated region
        $region65: #{_mlp_forward.1} parent=47 // pred_check
          %p472 = pneg %p471
        $region66: #{_mlp_forward.1} parent=47 // pred_check_branch
          %474 = sbr.rel (%p472) target = $region68
        $region67: #{_mlp_forward.1} parent=47 // pred_region
          %475 = vst [vmem:[#allocation2] sm:$0xff] 0.0
          %476 = vst [vmem:[#allocation2 + $0x8] sm:$0xff] 0.0
          %477 = vst [vmem:[#allocation2 + $0x10] sm:$0xff] 0.0
          %478 = vst [vmem:[#allocation2 + $0x18] sm:$0xff] 0.0
          %479 = vst [vmem:[#allocation2 + $0x20] sm:$0xff] 0.0
          %480 = vst [vmem:[#allocation2 + $0x28] sm:$0xff] 0.0
          %481 = vst [vmem:[#allocation2 + $0x30] sm:$0xff] 0.0
          %482 = vst [vmem:[#allocation2 + $0x38] sm:$0xff] 0.0
          %483 = vst [vmem:[#allocation2 + $0x40] sm:$0xff] 0.0
          %484 = vst [vmem:[#allocation2 + $0x48] sm:$0xff] 0.0
          %485 = vst [vmem:[#allocation2 + $0x50] sm:$0xff] 0.0
          %486 = vst [vmem:[#allocation2 + $0x58] sm:$0xff] 0.0
          %487 = vst [vmem:[#allocation2 + $0x60] sm:$0xff] 0.0
          %488 = vst [vmem:[#allocation2 + $0x68] sm:$0xff] 0.0
          %489 = vst [vmem:[#allocation2 + $0x70] sm:$0xff] 0.0
          %490 = vst [vmem:[#allocation2 + $0x78] sm:$0xff] 0.0
        $region68: #{_mlp_forward.1} parent=47 // pred_fallthru
          _
        %v491 = vld [vmem:[%s375] sm:$0xff]
        %v492 = vld [vmem:[%s375 + $0x8] sm:$0xff]
        %v493 = vld [vmem:[%s375 + $0x10] sm:$0xff]
        %v494 = vld [vmem:[%s375 + $0x18] sm:$0xff]
        %v495 = vld [vmem:[%s375 + $0x20] sm:$0xff]
        %v496 = vld [vmem:[%s375 + $0x28] sm:$0xff]
        %v497 = vld [vmem:[%s375 + $0x30] sm:$0xff]
        %v498 = vld [vmem:[%s375 + $0x38] sm:$0xff]
        %v499 = vld [vmem:[%s384] sm:$0xff]
        %v500 = vld [vmem:[%s384 + $0x8] sm:$0xff]
        %v501 = vld [vmem:[%s384 + $0x10] sm:$0xff]
        %v502 = vld [vmem:[%s384 + $0x18] sm:$0xff]
        %v503 = vld [vmem:[%s384 + $0x20] sm:$0xff]
        %v504 = vld [vmem:[%s384 + $0x28] sm:$0xff]
        %v505 = vld [vmem:[%s384 + $0x30] sm:$0xff]
        %v506 = vld [vmem:[%s384 + $0x38] sm:$0xff]
        %v507 = vld [vmem:[%s384 + $0x40] sm:$0xff]
        %v508 = vld [vmem:[%s384 + $0x48] sm:$0xff]
        %v509 = vld [vmem:[%s384 + $0x50] sm:$0xff]
        %v510 = vld [vmem:[%s384 + $0x58] sm:$0xff]
        %v511 = vld [vmem:[%s384 + $0x60] sm:$0xff]
        %v512 = vld [vmem:[%s384 + $0x68] sm:$0xff]
        %v513 = vld [vmem:[%s384 + $0x70] sm:$0xff]
        %v514 = vld [vmem:[%s384 + $0x78] sm:$0xff]
        %v515 = vunpack.c.l.s8.bf16 %v499
        %v516 = vunpack.c.l.s8.bf16 %v500
        %v517 = vunpack.c.h.s8.bf16 %v499
        %v518 = vunpack.c.h.s8.bf16 %v500
        %v519 = vunpack.c.l.s8.bf16 %v501
        %v520 = vunpack.c.l.s8.bf16 %v502
        %v521 = vunpack.c.h.s8.bf16 %v501
        %v522 = vunpack.c.h.s8.bf16 %v502
        %v523 = vunpack.c.l.s8.bf16 %v503
        %v524 = vunpack.c.l.s8.bf16 %v504
        %v525 = vunpack.c.h.s8.bf16 %v503
        %v526 = vunpack.c.h.s8.bf16 %v504
        %v527 = vunpack.c.l.s8.bf16 %v505
        %v528 = vunpack.c.l.s8.bf16 %v506
        %v529 = vunpack.c.h.s8.bf16 %v505
        %v530 = vunpack.c.h.s8.bf16 %v506
        %v531 = vunpack.c.l.s8.bf16 %v507
        %v532 = vunpack.c.l.s8.bf16 %v508
        %v533 = vunpack.c.h.s8.bf16 %v507
        %v534 = vunpack.c.h.s8.bf16 %v508
        %v535 = vunpack.c.l.s8.bf16 %v509
        %v536 = vunpack.c.l.s8.bf16 %v510
        %v537 = vunpack.c.h.s8.bf16 %v509
        %v538 = vunpack.c.h.s8.bf16 %v510
        %v539 = vunpack.c.l.s8.bf16 %v511
        %v540 = vunpack.c.l.s8.bf16 %v512
        %v541 = vunpack.c.h.s8.bf16 %v511
        %v542 = vunpack.c.h.s8.bf16 %v512
        %v543 = vunpack.c.l.s8.bf16 %v513
        %v544 = vunpack.c.l.s8.bf16 %v514
        %v545 = vunpack.c.h.s8.bf16 %v513
        %v546 = vunpack.c.h.s8.bf16 %v514
        %v555 = vunpack.c.l.b16 %v491
        %v556 = vunpack.c.h.b16 %v491
        %v557 = vunpack.c.l.b16 %v492
        %v558 = vunpack.c.h.b16 %v492
        %v559 = vunpack.c.l.b16 %v493
        %v560 = vunpack.c.h.b16 %v493
        %v561 = vunpack.c.l.b16 %v494
        %v562 = vunpack.c.h.b16 %v494
        %v563 = vunpack.c.l.b16 %v495
        %v564 = vunpack.c.h.b16 %v495
        %v565 = vunpack.c.l.b16 %v496
        %v566 = vunpack.c.h.b16 %v496
        %v567 = vunpack.c.l.b16 %v497
        %v568 = vunpack.c.h.b16 %v497
        %v569 = vunpack.c.l.b16 %v498
        %v570 = vunpack.c.h.b16 %v498
        %v571 = vpack.c.b16 %v557, %v555
        %v572 = vpack.c.b16 %v558, %v556
        %v573 = vpack.c.b16 %v561, %v559
        %v574 = vpack.c.b16 %v562, %v560
        %v575 = vpack.c.b16 %v565, %v563
        %v576 = vpack.c.b16 %v566, %v564
        %v577 = vpack.c.b16 %v569, %v567
        %v578 = vpack.c.b16 %v570, %v568
        %587 = vmatprep.subr.bf16.mxu0 %v530
        %588 = vmatpush1.bf16.msra.mxu0 %v529
        %589 = vmatprep.subr.bf16.mxu0 %v528
        %590 = vmatpush1.bf16.msra.mxu0 %v527
        %591 = vmatprep.subr.bf16.mxu0 %v526
        %592 = vmatpush1.bf16.msra.mxu0 %v525
        %593 = vmatprep.subr.bf16.mxu0 %v524
        %594 = vmatpush1.bf16.msra.mxu0 %v523
        %595 = vmatprep.subr.bf16.mxu0 %v522
        %596 = vmatpush1.bf16.msra.mxu0 %v521
        %597 = vmatprep.subr.bf16.mxu0 %v520
        %598 = vmatpush1.bf16.msra.mxu0 %v519
        %599 = vmatprep.subr.bf16.mxu0 %v518
        %600 = vmatpush1.bf16.msra.mxu0 %v517
        %601 = vmatprep.subr.bf16.mxu0 %v516
        %602 = vmatpush1.bf16.msra.mxu0 %v515
        %603 = vmatprep.subr.bf16.mxu0 %v546
        %604 = vmatpush2.bf16.msra.mxu0 %v545
        %605 = vmatprep.subr.bf16.mxu0 %v544
        %606 = vmatpush2.bf16.msra.mxu0 %v543
        %607 = vmatprep.subr.bf16.mxu0 %v542
        %608 = vmatpush2.bf16.msra.mxu0 %v541
        %609 = vmatprep.subr.bf16.mxu0 %v540
        %610 = vmatpush2.bf16.msra.mxu0 %v539
        %611 = vmatprep.subr.bf16.mxu0 %v538
        %612 = vmatpush2.bf16.msra.mxu0 %v537
        %613 = vmatprep.subr.bf16.mxu0 %v536
        %614 = vmatpush2.bf16.msra.mxu0 %v535
        %615 = vmatprep.subr.bf16.mxu0 %v534
        %616 = vmatpush2.bf16.msra.mxu0 %v533
        %617 = vmatprep.subr.bf16.mxu0 %v532
        %618 = vmatpush2.bf16.msra.mxu0 %v531
        %619 = vmatprep.mubr.bf16.mxu0 %v572
        %620 = vmatmul.mubr.bf16.gmra.mxu0 %v571
        %v621 = vpop.f32.mrf.mxu0
        %v622 = vadd.f32 0.0, %v621
        %v623 = vpop.f32.mrf.mxu0
        %v624 = vadd.f32 0.0, %v623
        %v625 = vpop.f32.mrf.mxu0
        %v626 = vadd.f32 0.0, %v625
        %v627 = vpop.f32.mrf.mxu0
        %v628 = vadd.f32 0.0, %v627
        %629 = vmatprep.mubr.bf16.mxu0 %v574
        %630 = vmatmul.mubr.bf16.gmra.mxu0 %v573
        %v631 = vpop.f32.mrf.mxu0
        %v632 = vadd.f32 0.0, %v631
        %v633 = vpop.f32.mrf.mxu0
        %v634 = vadd.f32 0.0, %v633
        %v635 = vpop.f32.mrf.mxu0
        %v636 = vadd.f32 0.0, %v635
        %v637 = vpop.f32.mrf.mxu0
        %v638 = vadd.f32 0.0, %v637
        %639 = vmatprep.mubr.bf16.mxu0 %v576
        %640 = vmatmul.mubr.bf16.gmra.mxu0 %v575
        %v641 = vpop.f32.mrf.mxu0
        %v642 = vadd.f32 0.0, %v641
        %v643 = vpop.f32.mrf.mxu0
        %v644 = vadd.f32 0.0, %v643
        %v645 = vpop.f32.mrf.mxu0
        %v646 = vadd.f32 0.0, %v645
        %v647 = vpop.f32.mrf.mxu0
        %v648 = vadd.f32 0.0, %v647
        %649 = vmatprep.mubr.bf16.mxu0 %v578
        %650 = vmatmul.mubr.bf16.gmra.mxu0 %v577
        %v651 = vpop.f32.mrf.mxu0
        %v652 = vadd.f32 0.0, %v651
        %v653 = vpop.f32.mrf.mxu0
        %v654 = vadd.f32 0.0, %v653
        %v655 = vpop.f32.mrf.mxu0
        %v656 = vadd.f32 0.0, %v655
        %v657 = vpop.f32.mrf.mxu0
        %v658 = vadd.f32 0.0, %v657
        %659 = vdwg.mxu0
        %v660 = vld [vmem:[%s461] sm:$0x3]
        %v662 = vlaneseq
        %v663 = vshrl.u32 %v662, 7
        %v664 = vsub.s32 0, %v663
        %v665 = vrot.slane %v660, %v664
        %v666 = vlaneseq
        %v667 = vshrl.u32 %v666, 7
        %v668 = vsub.s32 1, %v667
        %v669 = vrot.slane %v660, %v668
        %v672 = vmul.f32 %v622, %v665
        %v673 = vmul.f32 %v624, %v669
        %v674 = vmul.f32 %v626, %v665
        %v675 = vmul.f32 %v628, %v669
        %v676 = vmul.f32 %v632, %v665
        %v677 = vmul.f32 %v634, %v669
        %v678 = vmul.f32 %v636, %v665
        %v679 = vmul.f32 %v638, %v669
        %v680 = vmul.f32 %v642, %v665
        %v681 = vmul.f32 %v644, %v669
        %v682 = vmul.f32 %v646, %v665
        %v683 = vmul.f32 %v648, %v669
        %v684 = vmul.f32 %v652, %v665
        %v685 = vmul.f32 %v654, %v669
        %v686 = vmul.f32 %v656, %v665
        %v687 = vmul.f32 %v658, %v669
        %v688 = vld [vmem:[%s393] sm:$0xff]
        %v689 = vld [vmem:[%s393 + $0x8] sm:$0xff]
        %v690 = vld [vmem:[%s393 + $0x10] sm:$0xff]
        %v691 = vld [vmem:[%s393 + $0x18] sm:$0xff]
        %v692 = vld [vmem:[%s393 + $0x20] sm:$0xff]
        %v693 = vld [vmem:[%s393 + $0x28] sm:$0xff]
        %v694 = vld [vmem:[%s393 + $0x30] sm:$0xff]
        %v695 = vld [vmem:[%s393 + $0x38] sm:$0xff]
        %v696 = vld [vmem:[%s393 + $0x40] sm:$0xff]
        %v697 = vld [vmem:[%s393 + $0x48] sm:$0xff]
        %v698 = vld [vmem:[%s393 + $0x50] sm:$0xff]
        %v699 = vld [vmem:[%s393 + $0x58] sm:$0xff]
        %v700 = vld [vmem:[%s393 + $0x60] sm:$0xff]
        %v701 = vld [vmem:[%s393 + $0x68] sm:$0xff]
        %v702 = vld [vmem:[%s393 + $0x70] sm:$0xff]
        %v703 = vld [vmem:[%s393 + $0x78] sm:$0xff]
        %v704 = vunpack.c.l.s8.bf16 %v688
        %v705 = vunpack.c.l.s8.bf16 %v689
        %v706 = vunpack.c.h.s8.bf16 %v688
        %v707 = vunpack.c.h.s8.bf16 %v689
        %v708 = vunpack.c.l.s8.bf16 %v690
        %v709 = vunpack.c.l.s8.bf16 %v691
        %v710 = vunpack.c.h.s8.bf16 %v690
        %v711 = vunpack.c.h.s8.bf16 %v691
        %v712 = vunpack.c.l.s8.bf16 %v692
        %v713 = vunpack.c.l.s8.bf16 %v693
        %v714 = vunpack.c.h.s8.bf16 %v692
        %v715 = vunpack.c.h.s8.bf16 %v693
        %v716 = vunpack.c.l.s8.bf16 %v694
        %v717 = vunpack.c.l.s8.bf16 %v695
        %v718 = vunpack.c.h.s8.bf16 %v694
        %v719 = vunpack.c.h.s8.bf16 %v695
        %v720 = vunpack.c.l.s8.bf16 %v696
        %v721 = vunpack.c.l.s8.bf16 %v697
        %v722 = vunpack.c.h.s8.bf16 %v696
        %v723 = vunpack.c.h.s8.bf16 %v697
        %v724 = vunpack.c.l.s8.bf16 %v698
        %v725 = vunpack.c.l.s8.bf16 %v699
        %v726 = vunpack.c.h.s8.bf16 %v698
        %v727 = vunpack.c.h.s8.bf16 %v699
        %v728 = vunpack.c.l.s8.bf16 %v700
        %v729 = vunpack.c.l.s8.bf16 %v701
        %v730 = vunpack.c.h.s8.bf16 %v700
        %v731 = vunpack.c.h.s8.bf16 %v701
        %v732 = vunpack.c.l.s8.bf16 %v702
        %v733 = vunpack.c.l.s8.bf16 %v703
        %v734 = vunpack.c.h.s8.bf16 %v702
        %v735 = vunpack.c.h.s8.bf16 %v703
        %736 = vmatprep.subr.bf16.mxu0 %v719
        %737 = vmatpush1.bf16.msra.mxu0 %v718
        %738 = vmatprep.subr.bf16.mxu0 %v717
        %739 = vmatpush1.bf16.msra.mxu0 %v716
        %740 = vmatprep.subr.bf16.mxu0 %v715
        %741 = vmatpush1.bf16.msra.mxu0 %v714
        %742 = vmatprep.subr.bf16.mxu0 %v713
        %743 = vmatpush1.bf16.msra.mxu0 %v712
        %744 = vmatprep.subr.bf16.mxu0 %v711
        %745 = vmatpush1.bf16.msra.mxu0 %v710
        %746 = vmatprep.subr.bf16.mxu0 %v709
        %747 = vmatpush1.bf16.msra.mxu0 %v708
        %748 = vmatprep.subr.bf16.mxu0 %v707
        %749 = vmatpush1.bf16.msra.mxu0 %v706
        %750 = vmatprep.subr.bf16.mxu0 %v705
        %751 = vmatpush1.bf16.msra.mxu0 %v704
        %752 = vmatprep.subr.bf16.mxu0 %v735
        %753 = vmatpush2.bf16.msra.mxu0 %v734
        %754 = vmatprep.subr.bf16.mxu0 %v733
        %755 = vmatpush2.bf16.msra.mxu0 %v732
        %756 = vmatprep.subr.bf16.mxu0 %v731
        %757 = vmatpush2.bf16.msra.mxu0 %v730
        %758 = vmatprep.subr.bf16.mxu0 %v729
        %759 = vmatpush2.bf16.msra.mxu0 %v728
        %760 = vmatprep.subr.bf16.mxu0 %v727
        %761 = vmatpush2.bf16.msra.mxu0 %v726
        %762 = vmatprep.subr.bf16.mxu0 %v725
        %763 = vmatpush2.bf16.msra.mxu0 %v724
        %764 = vmatprep.subr.bf16.mxu0 %v723
        %765 = vmatpush2.bf16.msra.mxu0 %v722
        %766 = vmatprep.subr.bf16.mxu0 %v721
        %767 = vmatpush2.bf16.msra.mxu0 %v720
        %768 = vmatprep.mubr.bf16.mxu0 %v572
        %769 = vmatmul.mubr.bf16.gmra.mxu0 %v571
        %v770 = vpop.f32.mrf.mxu0
        %v771 = vadd.f32 0.0, %v770
        %v772 = vpop.f32.mrf.mxu0
        %v773 = vadd.f32 0.0, %v772
        %v774 = vpop.f32.mrf.mxu0
        %v775 = vadd.f32 0.0, %v774
        %v776 = vpop.f32.mrf.mxu0
        %v777 = vadd.f32 0.0, %v776
        %778 = vmatprep.mubr.bf16.mxu0 %v574
        %779 = vmatmul.mubr.bf16.gmra.mxu0 %v573
        %v780 = vpop.f32.mrf.mxu0
        %v781 = vadd.f32 0.0, %v780
        %v782 = vpop.f32.mrf.mxu0
        %v783 = vadd.f32 0.0, %v782
        %v784 = vpop.f32.mrf.mxu0
        %v785 = vadd.f32 0.0, %v784
        %v786 = vpop.f32.mrf.mxu0
        %v787 = vadd.f32 0.0, %v786
        %788 = vmatprep.mubr.bf16.mxu0 %v576
        %789 = vmatmul.mubr.bf16.gmra.mxu0 %v575
        %v790 = vpop.f32.mrf.mxu0
        %v791 = vadd.f32 0.0, %v790
        %v792 = vpop.f32.mrf.mxu0
        %v793 = vadd.f32 0.0, %v792
        %v794 = vpop.f32.mrf.mxu0
        %v795 = vadd.f32 0.0, %v794
        %v796 = vpop.f32.mrf.mxu0
        %v797 = vadd.f32 0.0, %v796
        %798 = vmatprep.mubr.bf16.mxu0 %v578
        %799 = vmatmul.mubr.bf16.gmra.mxu0 %v577
        %v800 = vpop.f32.mrf.mxu0
        %v801 = vadd.f32 0.0, %v800
        %v802 = vpop.f32.mrf.mxu0
        %v803 = vadd.f32 0.0, %v802
        %v804 = vpop.f32.mrf.mxu0
        %v805 = vadd.f32 0.0, %v804
        %v806 = vpop.f32.mrf.mxu0
        %v807 = vadd.f32 0.0, %v806
        %808 = vdwg.mxu0
        %v809 = vld [vmem:[%s467] sm:$0x3]
        %v811 = vlaneseq
        %v812 = vshrl.u32 %v811, 7
        %v813 = vsub.s32 0, %v812
        %v814 = vrot.slane %v809, %v813
        %v815 = vlaneseq
        %v816 = vshrl.u32 %v815, 7
        %v817 = vsub.s32 1, %v816
        %v818 = vrot.slane %v809, %v817
        %v821 = vmul.f32 %v771, %v814
        %v822 = vmul.f32 %v773, %v818
        %v823 = vmul.f32 %v775, %v814
        %v824 = vmul.f32 %v777, %v818
        %v825 = vmul.f32 %v781, %v814
        %v826 = vmul.f32 %v783, %v818
        %v827 = vmul.f32 %v785, %v814
        %v828 = vmul.f32 %v787, %v818
        %v829 = vmul.f32 %v791, %v814
        %v830 = vmul.f32 %v793, %v818
        %v831 = vmul.f32 %v795, %v814
        %v832 = vmul.f32 %v797, %v818
        %v833 = vmul.f32 %v801, %v814
        %v834 = vmul.f32 %v803, %v818
        %v835 = vmul.f32 %v805, %v814
        %v836 = vmul.f32 %v807, %v818
        %v837 = vxor.u32 %v672, 2147483648
        %v838 = vxor.u32 %v673, 2147483648
        %v839 = vxor.u32 %v674, 2147483648
        %v840 = vxor.u32 %v675, 2147483648
        %v841 = vxor.u32 %v676, 2147483648
        %v842 = vxor.u32 %v677, 2147483648
        %v843 = vxor.u32 %v678, 2147483648
        %v844 = vxor.u32 %v679, 2147483648
        %v845 = vxor.u32 %v680, 2147483648
        %v846 = vxor.u32 %v681, 2147483648
        %v847 = vxor.u32 %v682, 2147483648
        %v848 = vxor.u32 %v683, 2147483648
        %v849 = vxor.u32 %v684, 2147483648
        %v850 = vxor.u32 %v685, 2147483648
        %v851 = vxor.u32 %v686, 2147483648
        %v852 = vxor.u32 %v687, 2147483648
        %v853 = vmul.f32 %v837, 1.442695
        %v854 = vpow.pop %v853
        %v855 = vmul.f32 %v838, 1.442695
        %v856 = vpow.pop %v855
        %v857 = vmul.f32 %v839, 1.442695
        %v858 = vpow.pop %v857
        %v859 = vmul.f32 %v840, 1.442695
        %v860 = vpow.pop %v859
        %v861 = vmul.f32 %v841, 1.442695
        %v862 = vpow.pop %v861
        %v863 = vmul.f32 %v842, 1.442695
        %v864 = vpow.pop %v863
        %v865 = vmul.f32 %v843, 1.442695
        %v866 = vpow.pop %v865
        %v867 = vmul.f32 %v844, 1.442695
        %v868 = vpow.pop %v867
        %v869 = vmul.f32 %v845, 1.442695
        %v870 = vpow.pop %v869
        %v871 = vmul.f32 %v846, 1.442695
        %v872 = vpow.pop %v871
        %v873 = vmul.f32 %v847, 1.442695
        %v874 = vpow.pop %v873
        %v875 = vmul.f32 %v848, 1.442695
        %v876 = vpow.pop %v875
        %v877 = vmul.f32 %v849, 1.442695
        %v878 = vpow.pop %v877
        %v879 = vmul.f32 %v850, 1.442695
        %v880 = vpow.pop %v879
        %v881 = vmul.f32 %v851, 1.442695
        %v882 = vpow.pop %v881
        %v883 = vmul.f32 %v852, 1.442695
        %v884 = vpow.pop %v883
        %v885 = vadd.f32 %v854, 1.0
        %v886 = vadd.f32 %v856, 1.0
        %v887 = vadd.f32 %v858, 1.0
        %v888 = vadd.f32 %v860, 1.0
        %v889 = vadd.f32 %v862, 1.0
        %v890 = vadd.f32 %v864, 1.0
        %v891 = vadd.f32 %v866, 1.0
        %v892 = vadd.f32 %v868, 1.0
        %v893 = vadd.f32 %v870, 1.0
        %v894 = vadd.f32 %v872, 1.0
        %v895 = vadd.f32 %v874, 1.0
        %v896 = vadd.f32 %v876, 1.0
        %v897 = vadd.f32 %v878, 1.0
        %v898 = vadd.f32 %v880, 1.0
        %v899 = vadd.f32 %v882, 1.0
        %v900 = vadd.f32 %v884, 1.0
        %v901 = vrcp.pop %v885
        %v902 = vmul.f32 1.0, %v901
        %v903 = vrcp.pop %v886
        %v904 = vmul.f32 1.0, %v903
        %v905 = vrcp.pop %v887
        %v906 = vmul.f32 1.0, %v905
        %v907 = vrcp.pop %v888
        %v908 = vmul.f32 1.0, %v907
        %v909 = vrcp.pop %v889
        %v910 = vmul.f32 1.0, %v909
        %v911 = vrcp.pop %v890
        %v912 = vmul.f32 1.0, %v911
        %v913 = vrcp.pop %v891
        %v914 = vmul.f32 1.0, %v913
        %v915 = vrcp.pop %v892
        %v916 = vmul.f32 1.0, %v915
        %v917 = vrcp.pop %v893
        %v918 = vmul.f32 1.0, %v917
        %v919 = vrcp.pop %v894
        %v920 = vmul.f32 1.0, %v919
        %v921 = vrcp.pop %v895
        %v922 = vmul.f32 1.0, %v921
        %v923 = vrcp.pop %v896
        %v924 = vmul.f32 1.0, %v923
        %v925 = vrcp.pop %v897
        %v926 = vmul.f32 1.0, %v925
        %v927 = vrcp.pop %v898
        %v928 = vmul.f32 1.0, %v927
        %v929 = vrcp.pop %v899
        %v930 = vmul.f32 1.0, %v929
        %v931 = vrcp.pop %v900
        %v932 = vmul.f32 1.0, %v931
        %v933 = vmul.f32 %v672, %v902
        %v934 = vmul.f32 %v673, %v904
        %v935 = vmul.f32 %v674, %v906
        %v936 = vmul.f32 %v675, %v908
        %v937 = vmul.f32 %v676, %v910
        %v938 = vmul.f32 %v677, %v912
        %v939 = vmul.f32 %v678, %v914
        %v940 = vmul.f32 %v679, %v916
        %v941 = vmul.f32 %v680, %v918
        %v942 = vmul.f32 %v681, %v920
        %v943 = vmul.f32 %v682, %v922
        %v944 = vmul.f32 %v683, %v924
        %v945 = vmul.f32 %v684, %v926
        %v946 = vmul.f32 %v685, %v928
        %v947 = vmul.f32 %v686, %v930
        %v948 = vmul.f32 %v687, %v932
        %v949 = vmul.f32 %v933, %v821
        %v950 = vmul.f32 %v934, %v822
        %v951 = vmul.f32 %v935, %v823
        %v952 = vmul.f32 %v936, %v824
        %v953 = vmul.f32 %v937, %v825
        %v954 = vmul.f32 %v938, %v826
        %v955 = vmul.f32 %v939, %v827
        %v956 = vmul.f32 %v940, %v828
        %v957 = vmul.f32 %v941, %v829
        %v958 = vmul.f32 %v942, %v830
        %v959 = vmul.f32 %v943, %v831
        %v960 = vmul.f32 %v944, %v832
        %v961 = vmul.f32 %v945, %v833
        %v962 = vmul.f32 %v946, %v834
        %v963 = vmul.f32 %v947, %v835
        %v964 = vmul.f32 %v948, %v836
        %v965 = vld [vmem:[#allocation2] sm:$0xff]
        %v966 = vld [vmem:[#allocation2 + $0x8] sm:$0xff]
        %v967 = vld [vmem:[#allocation2 + $0x10] sm:$0xff]
        %v968 = vld [vmem:[#allocation2 + $0x18] sm:$0xff]
        %v969 = vld [vmem:[#allocation2 + $0x20] sm:$0xff]
        %v970 = vld [vmem:[#allocation2 + $0x28] sm:$0xff]
        %v971 = vld [vmem:[#allocation2 + $0x30] sm:$0xff]
        %v972 = vld [vmem:[#allocation2 + $0x38] sm:$0xff]
        %v973 = vld [vmem:[#allocation2 + $0x40] sm:$0xff]
        %v974 = vld [vmem:[#allocation2 + $0x48] sm:$0xff]
        %v975 = vld [vmem:[#allocation2 + $0x50] sm:$0xff]
        %v976 = vld [vmem:[#allocation2 + $0x58] sm:$0xff]
        %v977 = vld [vmem:[#allocation2 + $0x60] sm:$0xff]
        %v978 = vld [vmem:[#allocation2 + $0x68] sm:$0xff]
        %v979 = vld [vmem:[#allocation2 + $0x70] sm:$0xff]
        %v980 = vld [vmem:[#allocation2 + $0x78] sm:$0xff]
        %v981 = vpack.c.bf16 %v951, %v949
        %v982 = vpack.c.bf16 %v952, %v950
        %v983 = vpack.c.bf16 %v955, %v953
        %v984 = vpack.c.bf16 %v956, %v954
        %v985 = vpack.c.bf16 %v959, %v957
        %v986 = vpack.c.bf16 %v960, %v958
        %v987 = vpack.c.bf16 %v963, %v961
        %v988 = vpack.c.bf16 %v964, %v962
        %v989 = vld [vmem:[%s402] sm:$0xff]
        %v990 = vld [vmem:[%s402 + $0x8] sm:$0xff]
        %v991 = vld [vmem:[%s402 + $0x10] sm:$0xff]
        %v992 = vld [vmem:[%s402 + $0x18] sm:$0xff]
        %v993 = vld [vmem:[%s402 + $0x20] sm:$0xff]
        %v994 = vld [vmem:[%s402 + $0x28] sm:$0xff]
        %v995 = vld [vmem:[%s402 + $0x30] sm:$0xff]
        %v996 = vld [vmem:[%s402 + $0x38] sm:$0xff]
        %v997 = vld [vmem:[%s402 + $0x40] sm:$0xff]
        %v998 = vld [vmem:[%s402 + $0x48] sm:$0xff]
        %v999 = vld [vmem:[%s402 + $0x50] sm:$0xff]
        %v1000 = vld [vmem:[%s402 + $0x58] sm:$0xff]
        %v1001 = vld [vmem:[%s402 + $0x60] sm:$0xff]
        %v1002 = vld [vmem:[%s402 + $0x68] sm:$0xff]
        %v1003 = vld [vmem:[%s402 + $0x70] sm:$0xff]
        %v1004 = vld [vmem:[%s402 + $0x78] sm:$0xff]
        %v1005 = vunpack.c.l.s8.bf16 %v989
        %v1006 = vunpack.c.l.s8.bf16 %v990
        %v1007 = vunpack.c.h.s8.bf16 %v989
        %v1008 = vunpack.c.h.s8.bf16 %v990
        %v1009 = vunpack.c.l.s8.bf16 %v991
        %v1010 = vunpack.c.l.s8.bf16 %v992
        %v1011 = vunpack.c.h.s8.bf16 %v991
        %v1012 = vunpack.c.h.s8.bf16 %v992
        %v1013 = vunpack.c.l.s8.bf16 %v993
        %v1014 = vunpack.c.l.s8.bf16 %v994
        %v1015 = vunpack.c.h.s8.bf16 %v993
        %v1016 = vunpack.c.h.s8.bf16 %v994
        %v1017 = vunpack.c.l.s8.bf16 %v995
        %v1018 = vunpack.c.l.s8.bf16 %v996
        %v1019 = vunpack.c.h.s8.bf16 %v995
        %v1020 = vunpack.c.h.s8.bf16 %v996
        %v1021 = vunpack.c.l.s8.bf16 %v997
        %v1022 = vunpack.c.l.s8.bf16 %v998
        %v1023 = vunpack.c.h.s8.bf16 %v997
        %v1024 = vunpack.c.h.s8.bf16 %v998
        %v1025 = vunpack.c.l.s8.bf16 %v999
        %v1026 = vunpack.c.l.s8.bf16 %v1000
        %v1027 = vunpack.c.h.s8.bf16 %v999
        %v1028 = vunpack.c.h.s8.bf16 %v1000
        %v1029 = vunpack.c.l.s8.bf16 %v1001
        %v1030 = vunpack.c.l.s8.bf16 %v1002
        %v1031 = vunpack.c.h.s8.bf16 %v1001
        %v1032 = vunpack.c.h.s8.bf16 %v1002
        %v1033 = vunpack.c.l.s8.bf16 %v1003
        %v1034 = vunpack.c.l.s8.bf16 %v1004
        %v1035 = vunpack.c.h.s8.bf16 %v1003
        %v1036 = vunpack.c.h.s8.bf16 %v1004
        %1037 = vmatprep.subr.bf16.mxu0 %v1020
        %1038 = vmatpush1.bf16.msra.mxu0 %v1019
        %1039 = vmatprep.subr.bf16.mxu0 %v1018
        %1040 = vmatpush1.bf16.msra.mxu0 %v1017
        %1041 = vmatprep.subr.bf16.mxu0 %v1016
        %1042 = vmatpush1.bf16.msra.mxu0 %v1015
        %1043 = vmatprep.subr.bf16.mxu0 %v1014
        %1044 = vmatpush1.bf16.msra.mxu0 %v1013
        %1045 = vmatprep.subr.bf16.mxu0 %v1012
        %1046 = vmatpush1.bf16.msra.mxu0 %v1011
        %1047 = vmatprep.subr.bf16.mxu0 %v1010
        %1048 = vmatpush1.bf16.msra.mxu0 %v1009
        %1049 = vmatprep.subr.bf16.mxu0 %v1008
        %1050 = vmatpush1.bf16.msra.mxu0 %v1007
        %1051 = vmatprep.subr.bf16.mxu0 %v1006
        %1052 = vmatpush1.bf16.msra.mxu0 %v1005
        %1053 = vmatprep.subr.bf16.mxu0 %v1036
        %1054 = vmatpush2.bf16.msra.mxu0 %v1035
        %1055 = vmatprep.subr.bf16.mxu0 %v1034
        %1056 = vmatpush2.bf16.msra.mxu0 %v1033
        %1057 = vmatprep.subr.bf16.mxu0 %v1032
        %1058 = vmatpush2.bf16.msra.mxu0 %v1031
        %1059 = vmatprep.subr.bf16.mxu0 %v1030
        %1060 = vmatpush2.bf16.msra.mxu0 %v1029
        %1061 = vmatprep.subr.bf16.mxu0 %v1028
        %1062 = vmatpush2.bf16.msra.mxu0 %v1027
        %1063 = vmatprep.subr.bf16.mxu0 %v1026
        %1064 = vmatpush2.bf16.msra.mxu0 %v1025
        %1065 = vmatprep.subr.bf16.mxu0 %v1024
        %1066 = vmatpush2.bf16.msra.mxu0 %v1023
        %1067 = vmatprep.subr.bf16.mxu0 %v1022
        %1068 = vmatpush2.bf16.msra.mxu0 %v1021
        %1069 = vmatprep.mubr.bf16.mxu0 %v982
        %1070 = vmatmul.mubr.bf16.gmra.mxu0 %v981
        %v1071 = vpop.f32.mrf.mxu0
        %v1072 = vadd.f32 0.0, %v1071
        %v1073 = vpop.f32.mrf.mxu0
        %v1074 = vadd.f32 0.0, %v1073
        %v1075 = vpop.f32.mrf.mxu0
        %v1076 = vadd.f32 0.0, %v1075
        %v1077 = vpop.f32.mrf.mxu0
        %v1078 = vadd.f32 0.0, %v1077
        %1079 = vmatprep.mubr.bf16.mxu0 %v984
        %1080 = vmatmul.mubr.bf16.gmra.mxu0 %v983
        %v1081 = vpop.f32.mrf.mxu0
        %v1082 = vadd.f32 0.0, %v1081
        %v1083 = vpop.f32.mrf.mxu0
        %v1084 = vadd.f32 0.0, %v1083
        %v1085 = vpop.f32.mrf.mxu0
        %v1086 = vadd.f32 0.0, %v1085
        %v1087 = vpop.f32.mrf.mxu0
        %v1088 = vadd.f32 0.0, %v1087
        %1089 = vmatprep.mubr.bf16.mxu0 %v986
        %1090 = vmatmul.mubr.bf16.gmra.mxu0 %v985
        %v1091 = vpop.f32.mrf.mxu0
        %v1092 = vadd.f32 0.0, %v1091
        %v1093 = vpop.f32.mrf.mxu0
        %v1094 = vadd.f32 0.0, %v1093
        %v1095 = vpop.f32.mrf.mxu0
        %v1096 = vadd.f32 0.0, %v1095
        %v1097 = vpop.f32.mrf.mxu0
        %v1098 = vadd.f32 0.0, %v1097
        %1099 = vmatprep.mubr.bf16.mxu0 %v988
        %1100 = vmatmul.mubr.bf16.gmra.mxu0 %v987
        %v1101 = vpop.f32.mrf.mxu0
        %v1102 = vadd.f32 0.0, %v1101
        %v1103 = vpop.f32.mrf.mxu0
        %v1104 = vadd.f32 0.0, %v1103
        %v1105 = vpop.f32.mrf.mxu0
        %v1106 = vadd.f32 0.0, %v1105
        %v1107 = vpop.f32.mrf.mxu0
        %v1108 = vadd.f32 0.0, %v1107
        %1109 = vdwg.mxu0
        %v1110 = vadd.f32 %v965, %v1072
        %v1111 = vadd.f32 %v966, %v1074
        %v1112 = vadd.f32 %v967, %v1076
        %v1113 = vadd.f32 %v968, %v1078
        %v1114 = vadd.f32 %v969, %v1082
        %v1115 = vadd.f32 %v970, %v1084
        %v1116 = vadd.f32 %v971, %v1086
        %v1117 = vadd.f32 %v972, %v1088
        %v1118 = vadd.f32 %v973, %v1092
        %v1119 = vadd.f32 %v974, %v1094
        %v1120 = vadd.f32 %v975, %v1096
        %v1121 = vadd.f32 %v976, %v1098
        %v1122 = vadd.f32 %v977, %v1102
        %v1123 = vadd.f32 %v978, %v1104
        %v1124 = vadd.f32 %v979, %v1106
        %v1125 = vadd.f32 %v980, %v1108
        %1126 = vst [vmem:[#allocation2] sm:$0xff] %v1110
        %1127 = vst [vmem:[#allocation2 + $0x8] sm:$0xff] %v1111
        %1128 = vst [vmem:[#allocation2 + $0x10] sm:$0xff] %v1112
        %1129 = vst [vmem:[#allocation2 + $0x18] sm:$0xff] %v1113
        %1130 = vst [vmem:[#allocation2 + $0x20] sm:$0xff] %v1114
        %1131 = vst [vmem:[#allocation2 + $0x28] sm:$0xff] %v1115
        %1132 = vst [vmem:[#allocation2 + $0x30] sm:$0xff] %v1116
        %1133 = vst [vmem:[#allocation2 + $0x38] sm:$0xff] %v1117
        %1134 = vst [vmem:[#allocation2 + $0x40] sm:$0xff] %v1118
        %1135 = vst [vmem:[#allocation2 + $0x48] sm:$0xff] %v1119
        %1136 = vst [vmem:[#allocation2 + $0x50] sm:$0xff] %v1120
        %1137 = vst [vmem:[#allocation2 + $0x58] sm:$0xff] %v1121
        %1138 = vst [vmem:[#allocation2 + $0x60] sm:$0xff] %v1122
        %1139 = vst [vmem:[#allocation2 + $0x68] sm:$0xff] %v1123
        %1140 = vst [vmem:[#allocation2 + $0x70] sm:$0xff] %v1124
        %1141 = vst [vmem:[#allocation2 + $0x78] sm:$0xff] %v1125
        %p1142 = scmp.eq.s32.totalorder %s35, 1
        // Predicated region
        $region69: #{_mlp_forward.1} parent=47 // pred_check
          %p1143 = pneg %p1142
        $region70: #{_mlp_forward.1} parent=47 // pred_check_branch
          %1145 = sbr.rel (%p1143) target = $region72
        $region71: #{_mlp_forward.1} parent=47 // pred_region
          %v1146 = vld [vmem:[#allocation2] sm:$0xff]
          %v1147 = vld [vmem:[#allocation2 + $0x8] sm:$0xff]
          %v1148 = vld [vmem:[#allocation2 + $0x10] sm:$0xff]
          %v1149 = vld [vmem:[#allocation2 + $0x18] sm:$0xff]
          %v1150 = vld [vmem:[#allocation2 + $0x20] sm:$0xff]
          %v1151 = vld [vmem:[#allocation2 + $0x28] sm:$0xff]
          %v1152 = vld [vmem:[#allocation2 + $0x30] sm:$0xff]
          %v1153 = vld [vmem:[#allocation2 + $0x38] sm:$0xff]
          %v1154 = vld [vmem:[#allocation2 + $0x40] sm:$0xff]
          %v1155 = vld [vmem:[#allocation2 + $0x48] sm:$0xff]
          %v1156 = vld [vmem:[#allocation2 + $0x50] sm:$0xff]
          %v1157 = vld [vmem:[#allocation2 + $0x58] sm:$0xff]
          %v1158 = vld [vmem:[#allocation2 + $0x60] sm:$0xff]
          %v1159 = vld [vmem:[#allocation2 + $0x68] sm:$0xff]
          %v1160 = vld [vmem:[#allocation2 + $0x70] sm:$0xff]
          %v1161 = vld [vmem:[#allocation2 + $0x78] sm:$0xff]
          %v1162 = vld [vmem:[%s6] sm:$0x3]
          %v1164 = vlaneseq
          %v1165 = vshrl.u32 %v1164, 7
          %v1166 = vsub.s32 0, %v1165
          %v1167 = vrot.slane %v1162, %v1166
          %v1168 = vlaneseq
          %v1169 = vshrl.u32 %v1168, 7
          %v1170 = vsub.s32 1, %v1169
          %v1171 = vrot.slane %v1162, %v1170
          %v1174 = vmul.f32 %v1146, %v1167
          %v1175 = vmul.f32 %v1147, %v1171
          %v1176 = vmul.f32 %v1148, %v1167
          %v1177 = vmul.f32 %v1149, %v1171
          %v1178 = vmul.f32 %v1150, %v1167
          %v1179 = vmul.f32 %v1151, %v1171
          %v1180 = vmul.f32 %v1152, %v1167
          %v1181 = vmul.f32 %v1153, %v1171
          %v1182 = vmul.f32 %v1154, %v1167
          %v1183 = vmul.f32 %v1155, %v1171
          %v1184 = vmul.f32 %v1156, %v1167
          %v1185 = vmul.f32 %v1157, %v1171
          %v1186 = vmul.f32 %v1158, %v1167
          %v1187 = vmul.f32 %v1159, %v1171
          %v1188 = vmul.f32 %v1160, %v1167
          %v1189 = vmul.f32 %v1161, %v1171
          %v1190 = vpack.c.bf16 %v1176, %v1174
          %v1191 = vpack.c.bf16 %v1177, %v1175
          %v1192 = vpack.c.bf16 %v1180, %v1178
          %v1193 = vpack.c.bf16 %v1181, %v1179
          %v1194 = vpack.c.bf16 %v1184, %v1182
          %v1195 = vpack.c.bf16 %v1185, %v1183
          %v1196 = vpack.c.bf16 %v1188, %v1186
          %v1197 = vpack.c.bf16 %v1189, %v1187
          %v1206 = vunpack.c.l.b16 %v1190
          %v1207 = vunpack.c.l.b16 %v1191
          %v1208 = vunpack.c.h.b16 %v1190
          %v1209 = vunpack.c.h.b16 %v1191
          %v1210 = vunpack.c.l.b16 %v1192
          %v1211 = vunpack.c.l.b16 %v1193
          %v1212 = vunpack.c.h.b16 %v1192
          %v1213 = vunpack.c.h.b16 %v1193
          %v1214 = vunpack.c.l.b16 %v1194
          %v1215 = vunpack.c.l.b16 %v1195
          %v1216 = vunpack.c.h.b16 %v1194
          %v1217 = vunpack.c.h.b16 %v1195
          %v1218 = vunpack.c.l.b16 %v1196
          %v1219 = vunpack.c.l.b16 %v1197
          %v1220 = vunpack.c.h.b16 %v1196
          %v1221 = vunpack.c.h.b16 %v1197
          %v1222 = vpack.c.b16 %v1207, %v1206
          %v1223 = vpack.c.b16 %v1209, %v1208
          %v1224 = vpack.c.b16 %v1211, %v1210
          %v1225 = vpack.c.b16 %v1213, %v1212
          %v1226 = vpack.c.b16 %v1215, %v1214
          %v1227 = vpack.c.b16 %v1217, %v1216
          %v1228 = vpack.c.b16 %v1219, %v1218
          %v1229 = vpack.c.b16 %v1221, %v1220
          %1238 = vst [vmem:[%s455] sm:$0xff] %v1222
          %1239 = vst [vmem:[%s455 + $0x8] sm:$0xff] %v1223
          %1240 = vst [vmem:[%s455 + $0x10] sm:$0xff] %v1224
          %1241 = vst [vmem:[%s455 + $0x18] sm:$0xff] %v1225
          %1242 = vst [vmem:[%s455 + $0x20] sm:$0xff] %v1226
          %1243 = vst [vmem:[%s455 + $0x28] sm:$0xff] %v1227
          %1244 = vst [vmem:[%s455 + $0x30] sm:$0xff] %v1228
          %1245 = vst [vmem:[%s455 + $0x38] sm:$0xff] %v1229
        $region72: #{_mlp_forward.1} parent=47 // pred_fallthru
          _
        %s1246 = sand.u32 %s227, 1
        %s1247 = scalar_lea.sflag [#allocation5], %s1246
        %s1248 = sand.u32 %s227, 1
        %s1249 = smul.addr %s1248, 64
        %s1250 = scalar_lea.vmem [#allocation11], %s1249
        // Predicated region
        $region73: #{_mlp_forward.1} parent=47 // pred_check
          %p1251 = pneg %p237
        $region74: #{_mlp_forward.1} parent=47 // pred_check_branch
          %1253 = sbr.rel (%p1251) target = $region76
        $region75: #{_mlp_forward.1} parent=47 // pred_region
          %s1254 = smul.u32 8, %s34
          %s1256 = ssub.s32 1024, 1024
          %1257 = vsyncadd %s1247, %s1256
          %s1258 = smul.addr %s1254, 2
          %s1259 = smul.addr %s1258, 64
          %s1260 = scalar_lea.hbm %s7, %s1259
          %s1261 = sshll.u32 %s1250, 4
          %s1262 = int_to_ptr.vmem [resolvable:$true] %s1261
          %1267 = dma.vmem_to_hbm [thread:$0]  %s1262, 1024, %s1260, %s1247, 128, 128, 8
        $region76: #{_mlp_forward.1} parent=47 // pred_fallthru
          _
      $region48: #{_mlp_forward.1} parent=5 // pred_fallthru
        _
      %p1268 = scmp.le.s32.totalorder 2, %s25
      // Predicated region
      $region77: #{_mlp_forward.1} parent=5 // pred_check
        %p1269 = pneg %p1268
      $region78: #{_mlp_forward.1} parent=5 // pred_check_branch
        %1271 = sbr.rel (%p1269) target = $region80
      $region79: #{_mlp_forward.1} parent=5 // pred_region
        %s1272 = ssub.s32 %s25, 2
        // Predicated region
        $region81: #{_mlp_forward.1} parent=79 // pred_check
          %p1273 = pneg %p243
        $region82: #{_mlp_forward.1} parent=79 // pred_check_branch
          %1275 = sbr.rel (%p1273) target = $region84
        $region83: #{_mlp_forward.1} parent=79 // pred_region
          %s1276 = sand.u32 %s228, 1
          %s1277 = scalar_lea.sflag [#allocation5], %s1276
          %s1278 = sand.u32 %s228, 1
          %s1279 = smul.addr %s1278, 64
          %s1280 = scalar_lea.vmem [#allocation11], %s1279
          %1281 = dma.done %s1277, 1024
        $region84: #{_mlp_forward.1} parent=79 // pred_fallthru
          _
      $region80: #{_mlp_forward.1} parent=5 // pred_fallthru
        _
    $region6: #{_mlp_forward.1} parent=1 // loop_footer
      %s29 = sadd.s32 1, %s25
    $region7: #{_mlp_forward.1} parent=1 // loop_footer_branch
      %24 = sbr.rel target = $region3
    $region8: #{_mlp_forward.1} parent=1 // loop_exit
      _
    %1282 = vsyncpa [#allocation4], 1
    %s1283 = scalar_lea.sflag [#allocation4], 1
    %1284 = vsyncpa %s1283, 1
    %1285 = vsyncpa [#allocation7], 1
    %s1286 = scalar_lea.sflag [#allocation7], 1
    %1287 = vsyncpa %s1286, 1
    %1288 = vsyncpa [#allocation10], 1
    %s1289 = scalar_lea.sflag [#allocation10], 1
    %1290 = vsyncpa %s1289, 1
    %1291 = vsyncpa [#allocation5], 1
    %s1292 = scalar_lea.sflag [#allocation5], 1
    %1293 = vsyncpa %s1292, 1

</llo_original>
